<compile_context>
chip_gen: v7x
topology: tpu7x:2x2x1
jax: 0.10.0
libtpu: 0.0.40
codegen_flags: <defaults>
</compile_context>

<pallas_src>
from typing import Any, Mapping, Sequence, Union

import jax
import jax.numpy as jnp
from jax.experimental import pallas as pl
from jax.experimental.pallas import tpu as pltpu


def _round_up(x: int, m: int) -> int:
    return ((x + m - 1) // m) * m


# ----------------------------------------------------------------------------
# Pallas kernel: accumulate centered-Gram Frobenius norms (HSIC terms) for
# linear CKA between X (N, D1) and Y (N, D2), tiled over the sample dim N.
#   out[0] = ||Xc^T Yc||_F^2, out[1] = ||Yc^T Yc||_F^2, [out[2] = ||Xc^T Xc||_F^2]
# ----------------------------------------------------------------------------
def _make_cka_hsic_kernel(n_samples: int, compute_xx: bool):
    inv_n = 1.0 / float(n_samples)
    # Contract over the sample axis (axis 0) of both operands: the MXU consumes
    # the transposed-LHS form directly, no XLU transpose / (D, N) temporary.
    dn = (((0,), (0,)), ((), ()))

    def kernel(x_ref, y_ref, out_ref, *scratch):
        if compute_xx:
            gxy_ref, gyy_ref, gxx_ref, sx_ref, sy_ref = scratch
        else:
            gxy_ref, gyy_ref, sx_ref, sy_ref = scratch
            gxx_ref = None

        pid = pl.program_id(0)

        @pl.when(pid == 0)
        def _init():
            gxy_ref[...] = jnp.zeros_like(gxy_ref)
            gyy_ref[...] = jnp.zeros_like(gyy_ref)
            sx_ref[...] = jnp.zeros_like(sx_ref)
            sy_ref[...] = jnp.zeros_like(sy_ref)
            if compute_xx:
                gxx_ref[...] = jnp.zeros_like(gxx_ref)

        # Raw-dtype tiles feed the MXU (bf16 stays bf16); accumulation is f32.
        x = x_ref[...]  # (tN, D1)
        y = y_ref[...]  # (tN, D2)

        gxy_ref[...] += jax.lax.dot_general(
            x, y, dn, preferred_element_type=jnp.float32)
        gyy_ref[...] += jax.lax.dot_general(
            y, y, dn, preferred_element_type=jnp.float32)
        if compute_xx:
            gxx_ref[...] += jax.lax.dot_general(
                x, x, dn, preferred_element_type=jnp.float32)

        # Column sums (f32) used for the centering correction in the epilogue.
        # (The astype only feeds this XLU reduction; the MXU path stays bf16.)
        sx_ref[...] += jnp.sum(x.astype(jnp.float32), axis=0, keepdims=True)
        sy_ref[...] += jnp.sum(y.astype(jnp.float32), axis=0, keepdims=True)

        @pl.when(pid == pl.num_programs(0) - 1)
        def _finalize():
            sx = sx_ref[...]  # (1, D1)
            sy = sy_ref[...]  # (1, D2)
            # Centering correction: G_c = G - (1/N) * s_a s_b^T (outer product
            # via dot_general contracting the size-1 axis -> no reshapes).
            gxy_c = gxy_ref[...] - inv_n * jax.lax.dot_general(
                sx, sy, dn, preferred_element_type=jnp.float32)
            gyy_c = gyy_ref[...] - inv_n * jax.lax.dot_general(
                sy, sy, dn, preferred_element_type=jnp.float32)
            out_ref[0] = jnp.sum(gxy_c * gxy_c)
            out_ref[1] = jnp.sum(gyy_c * gyy_c)
            if compute_xx:
                gxx_c = gxx_ref[...] - inv_n * jax.lax.dot_general(
                    sx, sx, dn, preferred_element_type=jnp.float32)
                out_ref[2] = jnp.sum(gxx_c * gxx_c)

    return kernel


def cka_hsics_pallas(space1: jax.Array, space2: jax.Array, *,
                     block_n: int = 256, compute_xx: bool = True):
    """Returns (hsic_xy, hsic_yy[, hsic_xx]) as f32 scalars for linear CKA."""
    assert space1.ndim == 2 and space2.ndim == 2
    n, d1 = space1.shape
    n2, d2 = space2.shape
    assert n == n2, "spaces must share the sample dim"

    # Sample tile: multiple of 16 (bf16 sublane packing; also fine for f32).
    tn = min(block_n, _round_up(n, 16))
    n_pad = _round_up(n, tn)
    if n_pad != n:
        # Zero rows do not change the Grams or the column sums; the true N is
        # folded into the centering correction inside the kernel.
        space1 = jnp.pad(space1, ((0, n_pad - n), (0, 0)))
        space2 = jnp.pad(space2, ((0, n_pad - n), (0, 0)))

    # VMEM budget (v7x 64 MiB): dominated by the f32 Gram accumulators
    # (D1*D2 [+ D1^2] + D2^2) * 4B plus 2x double-buffered (tN, D) input tiles.
    # TODO(synk): tile D1/D2 as extra grid axes for very large feature dims.
    n_out = 3 if compute_xx else 2
    scratch = [
        pltpu.VMEM((d1, d2), jnp.float32),   # G_xy accumulator
        pltpu.VMEM((d2, d2), jnp.float32),   # G_yy accumulator
    ]
    if compute_xx:
        scratch.append(pltpu.VMEM((d1, d1), jnp.float32))  # G_xx accumulator
    scratch += [
        pltpu.VMEM((1, d1), jnp.float32),    # column sums of X
        pltpu.VMEM((1, d2), jnp.float32),    # column sums of Y
    ]

    out = pl.pallas_call(
        _make_cka_hsic_kernel(n, compute_xx),
        out_shape=jax.ShapeDtypeStruct((n_out,), jnp.float32),
        grid_spec=pltpu.PrefetchScalarGridSpec(
            num_scalar_prefetch=0,
            grid=(n_pad // tn,),
            in_specs=[
                pl.BlockSpec((tn, d1), lambda i: (i, 0)),
                pl.BlockSpec((tn, d2), lambda i: (i, 0)),
            ],
            out_specs=pl.BlockSpec(
                (n_out,), lambda i: (0,), memory_space=pltpu.MemorySpace.SMEM),
            scratch_shapes=scratch,
        ),
        compiler_params=pltpu.CompilerParams(
            dimension_semantics=("arbitrary",)),
    )(space1, space2)

    if compute_xx:
        return out[0], out[1], out[2]
    return out[0], out[1]


def _cka_ratio(hsic_xy, hsic_xx, hsic_yy):
    denom_sq = hsic_xx * hsic_yy
    # rsqrt instead of two sqrt + divide; guard degenerate (constant) spaces.
    return jnp.where(denom_sq > 0,
                     hsic_xy * jax.lax.rsqrt(denom_sq),
                     jnp.float32(0.0))


def linear_cka_pallas(space1: jax.Array, space2: jax.Array, *,
                      block_n: int = 256) -> jax.Array:
    """Linear CKA between two (N, D) spaces via a single fused Pallas kernel."""
    hsic_xy, hsic_yy, hsic_xx = cka_hsics_pallas(
        space1, space2, block_n=block_n, compute_xx=True)
    return _cka_ratio(hsic_xy, hsic_xx, hsic_yy)


# ----------------------------------------------------------------------------
# Faithful port of the `Metric` class skeleton.
# ----------------------------------------------------------------------------
class Metric:
    def __init__(self, name: str, device: Union[str, Any] = None) -> None:
        self._name: str = name

    def __repr__(self) -> str:
        return f"{self.__class__.__name__}(name={self.name})"

    @property
    def name(self) -> str:
        return self._name

    def _forward(self, space1, space2) -> Mapping[str, Any]:
        # Abstract in the original module; concretized by LinearCKAMetric.
        raise NotImplementedError

    def forward(self, space1, *others) -> Sequence[Mapping[str, Any]]:
        result = [self._forward(space1, other) for other in others]
        return result[0] if len(result) == 1 else result

    def __call__(self, space1, *others):
        return self.forward(space1, *others)


class LinearCKAMetric(Metric):
    """Concrete Metric whose `_forward` is the Pallas linear-CKA kernel."""

    def __init__(self, name: str, device: Union[str, Any] = None,
                 block_n: int = 256) -> None:
        super().__init__(name, device)
        self._block_n = block_n

    def _forward(self, space1, space2) -> Mapping[str, Any]:
        return {self.name: linear_cka_pallas(space1, space2,
                                             block_n=self._block_n)}

    def forward(self, space1, *others) -> Sequence[Mapping[str, Any]]:
        if len(others) <= 1:
            # Single pair: one fused launch (all three Grams in one kernel).
            return super().forward(space1, *others)
        # Multiple comparison spaces: hoist ||Xc^T Xc||_F^2 (depends only on
        # space1) so each additional pair only pays for the X^T Y / Y^T Y Grams
        # and a single HBM read of each operand.
        _, hsic_xx = cka_hsics_pallas(space1, space1, block_n=self._block_n,
                                      compute_xx=False)
        results = []
        for other in others:
            hsic_xy, hsic_yy = cka_hsics_pallas(space1, other,
                                                block_n=self._block_n,
                                                compute_xx=False)
            results.append({self.name: _cka_ratio(hsic_xy, hsic_xx, hsic_yy)})
        return results


# ----------------------------------------------------------------------------
# Pure-JAX reference (two-pass centering) for the smoke test.
# ----------------------------------------------------------------------------
def _linear_cka_ref(x, y):
    x = x.astype(jnp.float32)
    y = y.astype(jnp.float32)
    xc = x - jnp.mean(x, axis=0, keepdims=True)
    yc = y - jnp.mean(y, axis=0, keepdims=True)
    hxy = jnp.sum(jnp.dot(xc.T, yc) ** 2)
    hxx = jnp.sum(jnp.dot(xc.T, xc) ** 2)
    hyy = jnp.sum(jnp.dot(yc.T, yc) ** 2)
    return hxy / (jnp.sqrt(hxx) * jnp.sqrt(hyy))


# ----------------------------------------------------------------------------
# Demo / smoke test
# ----------------------------------------------------------------------------
if __name__ == "__main__":
    key = jax.random.PRNGKey(0)
    k1, k2, k3 = jax.random.split(key, 3)

    # N is not a tile multiple (exercises zero-padding); D is lane-aligned.
    n, d1, d2 = 200, 128, 128
    space1 = jax.random.normal(k1, (n, d1), dtype=jnp.float32)
    space2 = jax.random.normal(k2, (n, d2), dtype=jnp.float32)
    space3 = jax.random.normal(k3, (n, d2), dtype=jnp.float32)

    # block_n=64 -> 4 sample-tiles: exercises init / accumulate / finalize.
    metric = LinearCKAMetric(name="linear_cka", block_n=64)

    # Single `other` -> single mapping (mirrors the PyTorch forward contract).
    single = metric(space1, space2)
    cka_12 = jax.block_until_ready(single["linear_cka"])
    assert abs(float(cka_12) - float(_linear_cka_ref(space1, space2))) < 1e-3

    # Multiple `others` -> list of mappings (hoists the X-only Gram norm).
    multi = metric(space1, space2, space3)
    assert isinstance(multi, list) and len(multi) == 2
    for res, other in zip(multi, (space2, space3)):
        val = jax.block_until_ready(res["linear_cka"])
        assert abs(float(val) - float(_linear_cka_ref(space1, other))) < 1e-3

    # Self-similarity sanity check: CKA(X, X) == 1.
    self_sim = jax.block_until_ready(metric(space1, space1)["linear_cka"])
    assert abs(float(self_sim) - 1.0) < 1e-4, f"CKA(X, X) = {float(self_sim)}"

    # bf16 inputs feed the MXU directly (f32 accumulation in VMEM scratch).
    cka_bf16 = jax.block_until_ready(
        linear_cka_pallas(space1.astype(jnp.bfloat16),
                          space2.astype(jnp.bfloat16)))
    assert abs(float(cka_bf16) - float(cka_12)) < 5e-2

    print("KERNEL_OK")
</pallas_src>

<mosaic_0001>
module attributes {stable_mosaic.version = 11 : i64} {
  func.func @kernel(%arg0: i32, %arg1: memref<64x128xf32, #tpu.memory_space<vmem>>, %arg2: memref<64x128xf32, #tpu.memory_space<vmem>>, %arg3: memref<3xf32, #tpu.memory_space<smem>>, %arg4: memref<128x128xf32, #tpu.memory_space<vmem>>, %arg5: memref<128x128xf32, #tpu.memory_space<vmem>>, %arg6: memref<128x128xf32, #tpu.memory_space<vmem>>, %arg7: memref<1x128xf32, #tpu.memory_space<vmem>>, %arg8: memref<1x128xf32, #tpu.memory_space<vmem>>) attributes {dimension_semantics = [#tpu.dimension_semantics<arbitrary>], iteration_bounds = array<i64: 4>, scalar_prefetch = 0 : i64, scratch_operands = 5 : i64, tpu.core_type = #tpu.core_type<tc>, window_params = [{transform_indices = @transform_0, window_bounds = array<i64: 64, 128>}, {transform_indices = @transform_1, window_bounds = array<i64: 64, 128>}, {transform_indices = @transform_2, window_bounds = array<i64: 3>}]} {
    %c0_i32 = arith.constant 0 : i32
    %0 = arith.cmpi eq, %arg0, %c0_i32 : i32
    %1 = arith.extui %0 : i1 to i32
    %c0_i32_0 = arith.constant 0 : i32
    %2 = arith.cmpi ne, %1, %c0_i32_0 : i32
    scf.if %2 {
      %cst_29 = arith.constant 0.000000e+00 : f32
      %30 = vector.broadcast %cst_29 : f32 to vector<128x128xf32>
      %c0_30 = arith.constant 0 : index
      %c0_31 = arith.constant 0 : index
      %31 = vector.load %arg4[%c0_30, %c0_31] : memref<128x128xf32, #tpu.memory_space<vmem>>, vector<128x128xf32>
      tpu.vector_store %arg4[%c0_30, %c0_31], %30 {strides = array<i32>} : memref<128x128xf32, #tpu.memory_space<vmem>>, vector<128x128xf32>,
      %cst_32 = arith.constant 0.000000e+00 : f32
      %32 = vector.broadcast %cst_32 : f32 to vector<128x128xf32>
      %c0_33 = arith.constant 0 : index
      %c0_34 = arith.constant 0 : index
      %33 = vector.load %arg5[%c0_33, %c0_34] : memref<128x128xf32, #tpu.memory_space<vmem>>, vector<128x128xf32>
      tpu.vector_store %arg5[%c0_33, %c0_34], %32 {strides = array<i32>} : memref<128x128xf32, #tpu.memory_space<vmem>>, vector<128x128xf32>,
      %cst_35 = arith.constant 0.000000e+00 : f32
      %34 = vector.broadcast %cst_35 : f32 to vector<1x128xf32>
      %c0_36 = arith.constant 0 : index
      %c0_37 = arith.constant 0 : index
      %35 = vector.load %arg7[%c0_36, %c0_37] : memref<1x128xf32, #tpu.memory_space<vmem>>, vector<1x128xf32>
      tpu.vector_store %arg7[%c0_36, %c0_37], %34 {strides = array<i32>} : memref<1x128xf32, #tpu.memory_space<vmem>>, vector<1x128xf32>,
      %cst_38 = arith.constant 0.000000e+00 : f32
      %36 = vector.broadcast %cst_38 : f32 to vector<1x128xf32>
      %c0_39 = arith.constant 0 : index
      %c0_40 = arith.constant 0 : index
      %37 = vector.load %arg8[%c0_39, %c0_40] : memref<1x128xf32, #tpu.memory_space<vmem>>, vector<1x128xf32>
      tpu.vector_store %arg8[%c0_39, %c0_40], %36 {strides = array<i32>} : memref<1x128xf32, #tpu.memory_space<vmem>>, vector<1x128xf32>,
      %cst_41 = arith.constant 0.000000e+00 : f32
      %38 = vector.broadcast %cst_41 : f32 to vector<128x128xf32>
      %c0_42 = arith.constant 0 : index
      %c0_43 = arith.constant 0 : index
      %39 = vector.load %arg6[%c0_42, %c0_43] : memref<128x128xf32, #tpu.memory_space<vmem>>, vector<128x128xf32>
      tpu.vector_store %arg6[%c0_42, %c0_43], %38 {strides = array<i32>} : memref<128x128xf32, #tpu.memory_space<vmem>>, vector<128x128xf32>,
    } else {
    }
    %c0 = arith.constant 0 : index
    %c0_1 = arith.constant 0 : index
    %3 = vector.load %arg1[%c0, %c0_1] : memref<64x128xf32, #tpu.memory_space<vmem>>, vector<64x128xf32>
    %c0_2 = arith.constant 0 : index
    %c0_3 = arith.constant 0 : index
    %4 = vector.load %arg2[%c0_2, %c0_3] : memref<64x128xf32, #tpu.memory_space<vmem>>, vector<64x128xf32>
    %c0_4 = arith.constant 0 : index
    %c0_5 = arith.constant 0 : index
    %5 = vector.load %arg4[%c0_4, %c0_5] : memref<128x128xf32, #tpu.memory_space<vmem>>, vector<128x128xf32>
    %cst = arith.constant dense<0.000000e+00> : vector<128x128xf32>
    %6 = tpu.matmul %3, %4, %cst {dimension_numbers = #tpu.dot_dimension_numbers<[0], [0], [1], [1], [0, 1, 1, 1], [], []>} : vector<64x128xf32>, vector<64x128xf32>, vector<128x128xf32> -> vector<128x128xf32>
    %7 = arith.addf %5, %6 : vector<128x128xf32>
    %c0_6 = arith.constant 0 : index
    %c0_7 = arith.constant 0 : index
    %8 = vector.load %arg4[%c0_6, %c0_7] : memref<128x128xf32, #tpu.memory_space<vmem>>, vector<128x128xf32>
    tpu.vector_store %arg4[%c0_6, %c0_7], %7 {strides = array<i32>} : memref<128x128xf32, #tpu.memory_space<vmem>>, vector<128x128xf32>,
    %c0_8 = arith.constant 0 : index
    %c0_9 = arith.constant 0 : index
    %9 = vector.load %arg5[%c0_8, %c0_9] : memref<128x128xf32, #tpu.memory_space<vmem>>, vector<128x128xf32>
    %cst_10 = arith.constant dense<0.000000e+00> : vector<128x128xf32>
    %10 = tpu.matmul %4, %4, %cst_10 {dimension_numbers = #tpu.dot_dimension_numbers<[0], [0], [1], [1], [0, 1, 1, 1], [], []>} : vector<64x128xf32>, vector<64x128xf32>, vector<128x128xf32> -> vector<128x128xf32>
    %11 = arith.addf %9, %10 : vector<128x128xf32>
    %c0_11 = arith.constant 0 : index
    %c0_12 = arith.constant 0 : index
    %12 = vector.load %arg5[%c0_11, %c0_12] : memref<128x128xf32, #tpu.memory_space<vmem>>, vector<128x128xf32>
    tpu.vector_store %arg5[%c0_11, %c0_12], %11 {strides = array<i32>} : memref<128x128xf32, #tpu.memory_space<vmem>>, vector<128x128xf32>,
    %c0_13 = arith.constant 0 : index
    %c0_14 = arith.constant 0 : index
    %13 = vector.load %arg6[%c0_13, %c0_14] : memref<128x128xf32, #tpu.memory_space<vmem>>, vector<128x128xf32>
    %cst_15 = arith.constant dense<0.000000e+00> : vector<128x128xf32>
    %14 = tpu.matmul %3, %3, %cst_15 {dimension_numbers = #tpu.dot_dimension_numbers<[0], [0], [1], [1], [0, 1, 1, 1], [], []>} : vector<64x128xf32>, vector<64x128xf32>, vector<128x128xf32> -> vector<128x128xf32>
    %15 = arith.addf %13, %14 : vector<128x128xf32>
    %c0_16 = arith.constant 0 : index
    %c0_17 = arith.constant 0 : index
    %16 = vector.load %arg6[%c0_16, %c0_17] : memref<128x128xf32, #tpu.memory_space<vmem>>, vector<128x128xf32>
    tpu.vector_store %arg6[%c0_16, %c0_17], %15 {strides = array<i32>} : memref<128x128xf32, #tpu.memory_space<vmem>>, vector<128x128xf32>,
    %c0_18 = arith.constant 0 : index
    %c0_19 = arith.constant 0 : index
    %17 = vector.load %arg7[%c0_18, %c0_19] : memref<1x128xf32, #tpu.memory_space<vmem>>, vector<1x128xf32>
    %cst_20 = arith.constant dense<0.000000e+00> : vector<128xf32>
    %18 = vector.multi_reduction <add>, %3, %cst_20 [0] : vector<64x128xf32> to vector<128xf32>
    %19 = vector.shape_cast %18 : vector<128xf32> to vector<1x128xf32>
    %20 = arith.addf %17, %19 : vector<1x128xf32>
    %c0_21 = arith.constant 0 : index
    %c0_22 = arith.constant 0 : index
    %21 = vector.load %arg7[%c0_21, %c0_22] : memref<1x128xf32, #tpu.memory_space<vmem>>, vector<1x128xf32>
    tpu.vector_store %arg7[%c0_21, %c0_22], %20 {strides = array<i32>} : memref<1x128xf32, #tpu.memory_space<vmem>>, vector<1x128xf32>,
    %c0_23 = arith.constant 0 : index
    %c0_24 = arith.constant 0 : index
    %22 = vector.load %arg8[%c0_23, %c0_24] : memref<1x128xf32, #tpu.memory_space<vmem>>, vector<1x128xf32>
    %cst_25 = arith.constant dense<0.000000e+00> : vector<128xf32>
    %23 = vector.multi_reduction <add>, %4, %cst_25 [0] : vector<64x128xf32> to vector<128xf32>
    %24 = vector.shape_cast %23 : vector<128xf32> to vector<1x128xf32>
    %25 = arith.addf %22, %24 : vector<1x128xf32>
    %c0_26 = arith.constant 0 : index
    %c0_27 = arith.constant 0 : index
    %26 = vector.load %arg8[%c0_26, %c0_27] : memref<1x128xf32, #tpu.memory_space<vmem>>, vector<1x128xf32>
    tpu.vector_store %arg8[%c0_26, %c0_27], %25 {strides = array<i32>} : memref<1x128xf32, #tpu.memory_space<vmem>>, vector<1x128xf32>,
    %c3_i32 = arith.constant 3 : i32
    %27 = arith.cmpi eq, %arg0, %c3_i32 : i32
    %28 = arith.extui %27 : i1 to i32
    %c0_i32_28 = arith.constant 0 : i32
    %29 = arith.cmpi ne, %28, %c0_i32_28 : i32
    scf.if %29 {
      %c0_29 = arith.constant 0 : index
      %c0_30 = arith.constant 0 : index
      %30 = vector.load %arg7[%c0_29, %c0_30] : memref<1x128xf32, #tpu.memory_space<vmem>>, vector<1x128xf32>
      %c0_31 = arith.constant 0 : index
      %c0_32 = arith.constant 0 : index
      %31 = vector.load %arg8[%c0_31, %c0_32] : memref<1x128xf32, #tpu.memory_space<vmem>>, vector<1x128xf32>
      %c0_33 = arith.constant 0 : index
      %c0_34 = arith.constant 0 : index
      %32 = vector.load %arg4[%c0_33, %c0_34] : memref<128x128xf32, #tpu.memory_space<vmem>>, vector<128x128xf32>
      %cst_35 = arith.constant dense<0.000000e+00> : vector<128x128xf32>
      %33 = tpu.matmul %30, %31, %cst_35 {dimension_numbers = #tpu.dot_dimension_numbers<[0], [0], [1], [1], [0, 1, 1, 1], [], []>} : vector<1x128xf32>, vector<1x128xf32>, vector<128x128xf32> -> vector<128x128xf32>
      %cst_36 = arith.constant 5.000000e-03 : f32
      %34 = vector.broadcast %cst_36 : f32 to vector<128x128xf32>
      %35 = arith.mulf %34, %33 : vector<128x128xf32>
      %36 = arith.subf %32, %35 : vector<128x128xf32>
      %c0_37 = arith.constant 0 : index
      %c0_38 = arith.constant 0 : index
      %37 = vector.load %arg5[%c0_37, %c0_38] : memref<128x128xf32, #tpu.memory_space<vmem>>, vector<128x128xf32>
      %cst_39 = arith.constant dense<0.000000e+00> : vector<128x128xf32>
      %38 = tpu.matmul %31, %31, %cst_39 {dimension_numbers = #tpu.dot_dimension_numbers<[0], [0], [1], [1], [0, 1, 1, 1], [], []>} : vector<1x128xf32>, vector<1x128xf32>, vector<128x128xf32> -> vector<128x128xf32>
      %cst_40 = arith.constant 5.000000e-03 : f32
      %39 = vector.broadcast %cst_40 : f32 to vector<128x128xf32>
      %40 = arith.mulf %39, %38 : vector<128x128xf32>
      %41 = arith.subf %37, %40 : vector<128x128xf32>
      %42 = arith.mulf %36, %36 : vector<128x128xf32>
      %43 = vector.shape_cast %42 : vector<128x128xf32> to vector<1x128x128xf32>
      %cst_41 = arith.constant dense<0.000000e+00> : vector<1xf32>
      %44 = vector.multi_reduction <add>, %43, %cst_41 [1, 2] : vector<1x128x128xf32> to vector<1xf32>
      %45 = vector.shape_cast %44 : vector<1xf32> to vector<1x1x1xf32>
      %46 = vector.extract %45[0, 0, 0] : f32 from vector<1x1x1xf32>
      %c0_42 = arith.constant 0 : index
      %47 = memref.load %arg3[%c0_42] : memref<3xf32, #tpu.memory_space<smem>>
      memref.store %46, %arg3[%c0_42] : memref<3xf32, #tpu.memory_space<smem>>
      %48 = arith.mulf %41, %41 : vector<128x128xf32>
      %49 = vector.shape_cast %48 : vector<128x128xf32> to vector<1x128x128xf32>
      %cst_43 = arith.constant dense<0.000000e+00> : vector<1xf32>
      %50 = vector.multi_reduction <add>, %49, %cst_43 [1, 2] : vector<1x128x128xf32> to vector<1xf32>
      %51 = vector.shape_cast %50 : vector<1xf32> to vector<1x1x1xf32>
      %52 = vector.extract %51[0, 0, 0] : f32 from vector<1x1x1xf32>
      %c1 = arith.constant 1 : index
      %53 = memref.load %arg3[%c1] : memref<3xf32, #tpu.memory_space<smem>>
      memref.store %52, %arg3[%c1] : memref<3xf32, #tpu.memory_space<smem>>
      %c0_44 = arith.constant 0 : index
      %c0_45 = arith.constant 0 : index
      %54 = vector.load %arg6[%c0_44, %c0_45] : memref<128x128xf32, #tpu.memory_space<vmem>>, vector<128x128xf32>
      %cst_46 = arith.constant dense<0.000000e+00> : vector<128x128xf32>
      %55 = tpu.matmul %30, %30, %cst_46 {dimension_numbers = #tpu.dot_dimension_numbers<[0], [0], [1], [1], [0, 1, 1, 1], [], []>} : vector<1x128xf32>, vector<1x128xf32>, vector<128x128xf32> -> vector<128x128xf32>
      %cst_47 = arith.constant 5.000000e-03 : f32
      %56 = vector.broadcast %cst_47 : f32 to vector<128x128xf32>
      %57 = arith.mulf %56, %55 : vector<128x128xf32>
      %58 = arith.subf %54, %57 : vector<128x128xf32>
      %59 = arith.mulf %58, %58 : vector<128x128xf32>
      %60 = vector.shape_cast %59 : vector<128x128xf32> to vector<1x128x128xf32>
      %cst_48 = arith.constant dense<0.000000e+00> : vector<1xf32>
      %61 = vector.multi_reduction <add>, %60, %cst_48 [1, 2] : vector<1x128x128xf32> to vector<1xf32>
      %62 = vector.shape_cast %61 : vector<1xf32> to vector<1x1x1xf32>
      %63 = vector.extract %62[0, 0, 0] : f32 from vector<1x1x1xf32>
      %c2 = arith.constant 2 : index
      %64 = memref.load %arg3[%c2] : memref<3xf32, #tpu.memory_space<smem>>
      memref.store %63, %arg3[%c2] : memref<3xf32, #tpu.memory_space<smem>>
    } else {
    }
    return
  }
  func.func @transform_0(%arg0: i32) -> (i32, i32) {
    %c0_i32 = arith.constant 0 : i32
    %c0_i32_0 = arith.constant 0 : i32
    return %arg0, %c0_i32 : i32, i32
  }
  func.func @transform_1(%arg0: i32) -> (i32, i32) {
    %c0_i32 = arith.constant 0 : i32
    %c0_i32_0 = arith.constant 0 : i32
    return %arg0, %c0_i32 : i32, i32
  }
  func.func @transform_2(%arg0: i32) -> i32 {
    %c0_i32 = arith.constant 0 : i32
    %c0_i32_0 = arith.constant 0 : i32
    return %c0_i32 : i32
  }
}

</mosaic_0001>

<llo_original>
// kernel: tpu_custom_call.1
$region0: #{tpu_custom_call.1}
  #allocation0 [shape = 'u32[]', space=smem, size = 0x4, offset = 0x4, fixed_abs, tag = 'smem constant byte address 0x4 - core index']
  #allocation1 [shape = 'u32[144,128]{1,0:T(1,128)}', space=vmem, size = 0x12000, scoped, tag = 'internal scratch']
  #allocation2 [shape = 'f32[128,128]{1,0:T(8,128)}', space=vmem, size = 0x10000, scoped, tag = 'scratch operand']
  #allocation3 [shape = 'f32[128,128]{1,0:T(8,128)}', space=vmem, size = 0x10000, scoped, tag = 'scratch operand']
  #allocation4 [shape = 'f32[128,128]{1,0:T(8,128)}', space=vmem, size = 0x10000, scoped, tag = 'scratch operand']
  #allocation5 [shape = 'f32[1,128]{1,0:T(1,128)}', space=vmem, size = 0x200, scoped, tag = 'scratch operand']
  #allocation6 [shape = 'f32[1,128]{1,0:T(1,128)}', space=vmem, size = 0x200, scoped, tag = 'scratch operand']
  %s0 = inlined_call_operand.hbm [shape: f32[256,128], index: 0, kind: input, shape index: {}]
  %s1 = inlined_call_operand.hbm [shape: f32[256,128], index: 1, kind: input, shape index: {}]
  %s2 = inlined_call_operand.hbm [shape: f32[3], index: 2, kind: output, shape index: {}]
  %s3 = sld [smem:[#allocation0]]
  $region57: #{tpu_custom_call.1} parent=0
    _
  %s5 = ssub.s32 1, %s3
  %s6 = scalar_select 0, %s5, %s3
  $region1: #{tpu_custom_call.1} parent=0
    #allocation7 [shape = 'u8[65536]{0}', space=vmem, size = 0x10000, scoped, tag = 'input window, operand 0']
    #allocation8 [shape = 's32[2]{0}', space=sflag, size = 0x8, scoped, tag = 'scoped memory for tpu_custom_call.1']
    #allocation9 [shape = 's32[2]{0}', space=sflag, size = 0x8, scoped, tag = 'scoped memory for tpu_custom_call.1']
    #allocation10 [shape = 'u8[65536]{0}', space=vmem, size = 0x10000, scoped, tag = 'input window, operand 1']
    #allocation11 [shape = 's32[2]{0}', space=sflag, size = 0x8, scoped, tag = 'scoped memory for tpu_custom_call.1']
    #allocation12 [shape = 'u8[512]{0}', space=smem, size = 0x200, scoped, tag = 'output window, operand 0, single buffered']
    %7 = vsyncpa [#allocation8], 0
    %s8 = scalar_lea.sflag [#allocation8], 1
    %9 = vsyncpa %s8, 0
    %10 = vsyncpa [#allocation11], 0
    %s11 = scalar_lea.sflag [#allocation11], 1
    %12 = vsyncpa %s11, 0
    %13 = vsyncpa [#allocation9], 0
    loop: start=0, step=1, limit=6
    $region2: #{tpu_custom_call.1} parent=1 // loop_pre_header
      _
    $region3: #{tpu_custom_call.1} parent=1 // loop_header
      %s15 = sphi 0, %s19
      %p16 = scmp.ge.s32.totalorder %s15, 6
      %s25 = sphi 0, %s27
      %s28 = sphi 0, %s25
      %s29 = sphi 0, %s28
      %s45 = sphi 0, %s29
      %s51 = sphi 0, %s53
      %s54 = sphi 0, %s51
      %s55 = sphi 0, %s54
      %s71 = sphi 0, %s55
      %s75 = sphi 0, %s75
      %s77 = sphi 0, %s75
      %s78 = sphi 0, %s77
      %s92 = sphi 0, %s78
    $region4: #{tpu_custom_call.1} parent=1 // loop_header_branch
      %18 = sbr.rel (%p16) target = $region8
    $region5: #{tpu_custom_call.1} parent=1 // loop_body
      %s20 = ssub.s32 %s15, 1
      %s21 = ssub.s32 %s15, 2
      %s22 = sadd.s32 %s15, 1
      %s23 = ssub.s32 %s15, %s22
      %p24 = scmp.eq.s32.totalorder %s23, 0
      %s26 = sadd.s32 %s25, 1
      %s27 = scalar_select %p24, %s25, %s26
      %p30 = pneg %p24
      %p31 = scmp.eq.s32.totalorder %s15, 3
      %p32 = por %p30, %p31
      %p33 = scmp.ne.s32.totalorder %s25, %s28
      %p34 = scmp.eq.s32.totalorder %s15, 0
      %p35 = por %p33, %p34
      %p36 = scmp.ne.s32.totalorder %s25, %s28
      %p37 = scmp.eq.s32.totalorder %s20, 3
      %p38 = por %p36, %p37
      %p39 = scmp.ne.s32.totalorder %s28, %s29
      %p40 = scmp.eq.s32.totalorder %s20, 0
      %p41 = por %p39, %p40
      %p42 = scmp.ne.s32.totalorder %s28, %s29
      %p43 = scmp.eq.s32.totalorder %s21, 3
      %p44 = por %p42, %p43
      %p46 = scmp.ne.s32.totalorder %s29, %s45
      %p47 = scmp.eq.s32.totalorder %s21, 0
      %p48 = por %p46, %p47
      %s49 = ssub.s32 %s15, %s22
      %p50 = scmp.eq.s32.totalorder %s49, 0
      %s52 = sadd.s32 %s51, 1
      %s53 = scalar_select %p50, %s51, %s52
      %p56 = pneg %p50
      %p57 = scmp.eq.s32.totalorder %s15, 3
      %p58 = por %p56, %p57
      %p59 = scmp.ne.s32.totalorder %s51, %s54
      %p60 = scmp.eq.s32.totalorder %s15, 0
      %p61 = por %p59, %p60
      %p62 = scmp.ne.s32.totalorder %s51, %s54
      %p63 = scmp.eq.s32.totalorder %s20, 3
      %p64 = por %p62, %p63
      %p65 = scmp.ne.s32.totalorder %s54, %s55
      %p66 = scmp.eq.s32.totalorder %s20, 0
      %p67 = por %p65, %p66
      %p68 = scmp.ne.s32.totalorder %s54, %s55
      %p69 = scmp.eq.s32.totalorder %s21, 3
      %p70 = por %p68, %p69
      %p72 = scmp.ne.s32.totalorder %s55, %s71
      %p73 = scmp.eq.s32.totalorder %s21, 0
      %p74 = por %p72, %p73
      %s76 = sadd.s32 %s75, 1
      %p79 = scmp.eq.s32.totalorder %s15, 3
      %p80 = scmp.ne.s32.totalorder %s75, %s77
      %p81 = scmp.eq.s32.totalorder %s15, 0
      %p82 = por %p80, %p81
      %p83 = scmp.ne.s32.totalorder %s75, %s77
      %p84 = scmp.eq.s32.totalorder %s20, 3
      %p85 = por %p83, %p84
      %p86 = scmp.ne.s32.totalorder %s77, %s78
      %p87 = scmp.eq.s32.totalorder %s20, 0
      %p88 = por %p86, %p87
      %p89 = scmp.ne.s32.totalorder %s77, %s78
      %p90 = scmp.eq.s32.totalorder %s21, 3
      %p91 = por %p89, %p90
      %p93 = scmp.ne.s32.totalorder %s78, %s92
      %p94 = scmp.eq.s32.totalorder %s21, 0
      %p95 = por %p93, %p94
      %p96 = scmp.le.s32.totalorder 1, %s15
      %p97 = scmp.lt.s32.totalorder %s15, 5
      %p98 = pnand %p96, %p97
      %p99 = pneg %p98
      // Predicated region
      $region9: #{tpu_custom_call.1} parent=5 // pred_check
        _
      $region10: #{tpu_custom_call.1} parent=5 // pred_check_branch
        %101 = sbr.rel (%p98) target = $region12
      $region11: #{tpu_custom_call.1} parent=5 // pred_region
        %s102 = ssub.s32 %s15, 1
      $region12: #{tpu_custom_call.1} parent=5 // pred_fallthru
        _
      %p103 = scmp.lt.s32.totalorder %s15, 4
      // Predicated region
      $region13: #{tpu_custom_call.1} parent=5 // pred_check
        %p104 = pneg %p103
      $region14: #{tpu_custom_call.1} parent=5 // pred_check_branch
        %106 = sbr.rel (%p104) target = $region16
      $region15: #{tpu_custom_call.1} parent=5 // pred_region
        // Predicated region
        $region17: #{tpu_custom_call.1} parent=15 // pred_check
          %p107 = pneg %p35
        $region18: #{tpu_custom_call.1} parent=15 // pred_check_branch
          %109 = sbr.rel (%p107) target = $region20
        $region19: #{tpu_custom_call.1} parent=15 // pred_region
          %s110 = sand.u32 %s25, 1
          %s111 = scalar_lea.sflag [#allocation8], %s110
          %s112 = sand.u32 %s25, 1
          %s113 = smul.addr %s112, 64
          %s114 = scalar_lea.vmem [#allocation7], %s113
          %s115 = smul.u32 8, %s15
          %s117 = ssub.s32 1024, 1024
          %118 = vsyncadd %s111, %s117
          %s119 = smul.addr %s115, 128
          %s120 = scalar_lea.hbm %s0, %s119
          %s121 = sshll.u32 %s114, 4
          %s122 = int_to_ptr.vmem [resolvable:$true] %s121
          %127 = dma.hbm_to_vmem [thread:$0]  %s120, 1024, %s122, %s111, 128, 128, 8
        $region20: #{tpu_custom_call.1} parent=15 // pred_fallthru
          _
        // Predicated region
        $region21: #{tpu_custom_call.1} parent=15 // pred_check
          %p128 = pneg %p61
        $region22: #{tpu_custom_call.1} parent=15 // pred_check_branch
          %130 = sbr.rel (%p128) target = $region24
        $region23: #{tpu_custom_call.1} parent=15 // pred_region
          %s131 = sand.u32 %s51, 1
          %s132 = scalar_lea.sflag [#allocation11], %s131
          %s133 = sand.u32 %s51, 1
          %s134 = smul.addr %s133, 64
          %s135 = scalar_lea.vmem [#allocation10], %s134
          %s136 = smul.u32 8, %s15
          %s138 = ssub.s32 1024, 1024
          %139 = vsyncadd %s132, %s138
          %s140 = smul.addr %s136, 128
          %s141 = scalar_lea.hbm %s1, %s140
          %s142 = sshll.u32 %s135, 4
          %s143 = int_to_ptr.vmem [resolvable:$true] %s142
          %148 = dma.hbm_to_vmem [thread:$0]  %s141, 1024, %s143, %s132, 128, 128, 8
        $region24: #{tpu_custom_call.1} parent=15 // pred_fallthru
          _
      $region16: #{tpu_custom_call.1} parent=5 // pred_fallthru
        _
      %p149 = scmp.le.s32.totalorder 1, %s15
      %p150 = scmp.lt.s32.totalorder %s15, 5
      %p151 = pnand %p149, %p150
      %p152 = pneg %p151
      // Predicated region
      $region25: #{tpu_custom_call.1} parent=5 // pred_check
        _
      $region26: #{tpu_custom_call.1} parent=5 // pred_check_branch
        %154 = sbr.rel (%p151) target = $region28
      $region27: #{tpu_custom_call.1} parent=5 // pred_region
        %s155 = ssub.s32 %s15, 1
        %s156 = sand.u32 %s28, 1
        %s157 = scalar_lea.sflag [#allocation8], %s156
        %s158 = sand.u32 %s28, 1
        %s159 = smul.addr %s158, 64
        %s160 = scalar_lea.vmem [#allocation7], %s159
        // Predicated region
        $region29: #{tpu_custom_call.1} parent=27 // pred_check
          %p161 = pneg %p41
        $region30: #{tpu_custom_call.1} parent=27 // pred_check_branch
          %163 = sbr.rel (%p161) target = $region32
        $region31: #{tpu_custom_call.1} parent=27 // pred_region
          %164 = dma.done %s157, 1024
        $region32: #{tpu_custom_call.1} parent=27 // pred_fallthru
          _
        %s165 = sand.u32 %s54, 1
        %s166 = scalar_lea.sflag [#allocation11], %s165
        %s167 = sand.u32 %s54, 1
        %s168 = smul.addr %s167, 64
        %s169 = scalar_lea.vmem [#allocation10], %s168
        // Predicated region
        $region33: #{tpu_custom_call.1} parent=27 // pred_check
          %p170 = pneg %p67
        $region34: #{tpu_custom_call.1} parent=27 // pred_check_branch
          %172 = sbr.rel (%p170) target = $region36
        $region35: #{tpu_custom_call.1} parent=27 // pred_region
          %173 = dma.done %s166, 1024
        $region36: #{tpu_custom_call.1} parent=27 // pred_fallthru
          _
        %s174 = sand.u32 %s28, 1
        %s175 = scalar_lea.sflag [#allocation8], %s174
        %s176 = sand.u32 %s28, 1
        %s177 = smul.addr %s176, 64
        %s178 = scalar_lea.vmem [#allocation7], %s177
        %p179 = pneg %p41
        %p180 = pneg %p38
        %s181 = sand.u32 %s54, 1
        %s182 = scalar_lea.sflag [#allocation11], %s181
        %s183 = sand.u32 %s54, 1
        %s184 = smul.addr %s183, 64
        %s185 = scalar_lea.vmem [#allocation10], %s184
        %p186 = pneg %p67
        %p187 = pneg %p64
        %p188 = pneg %p88
        %p189 = pneg %p85
        %s190 = smul.u32 8, %s20
        %s191 = smul.u32 8, %s20
        %p192 = scmp.eq.s32.totalorder %s20, 0
        // Predicated region
        $region37: #{tpu_custom_call.1} parent=27 // pred_check
          %p193 = pneg %p192
        $region38: #{tpu_custom_call.1} parent=27 // pred_check_branch
          %195 = sbr.rel (%p193) target = $region40
        $region39: #{tpu_custom_call.1} parent=27 // pred_region
          %196 = vst [vmem:[#allocation2] sm:$0xff] 0.0
          %197 = vst [vmem:[#allocation2 + $0x8] sm:$0xff] 0.0
          %198 = vst [vmem:[#allocation2 + $0x10] sm:$0xff] 0.0
          %199 = vst [vmem:[#allocation2 + $0x18] sm:$0xff] 0.0
          %200 = vst [vmem:[#allocation2 + $0x20] sm:$0xff] 0.0
          %201 = vst [vmem:[#allocation2 + $0x28] sm:$0xff] 0.0
          %202 = vst [vmem:[#allocation2 + $0x30] sm:$0xff] 0.0
          %203 = vst [vmem:[#allocation2 + $0x38] sm:$0xff] 0.0
          %204 = vst [vmem:[#allocation2 + $0x40] sm:$0xff] 0.0
          %205 = vst [vmem:[#allocation2 + $0x48] sm:$0xff] 0.0
          %206 = vst [vmem:[#allocation2 + $0x50] sm:$0xff] 0.0
          %207 = vst [vmem:[#allocation2 + $0x58] sm:$0xff] 0.0
          %208 = vst [vmem:[#allocation2 + $0x60] sm:$0xff] 0.0
          %209 = vst [vmem:[#allocation2 + $0x68] sm:$0xff] 0.0
          %210 = vst [vmem:[#allocation2 + $0x70] sm:$0xff] 0.0
          %211 = vst [vmem:[#allocation2 + $0x78] sm:$0xff] 0.0
          %212 = vst [vmem:[#allocation3] sm:$0xff] 0.0
          %213 = vst [vmem:[#allocation3 + $0x8] sm:$0xff] 0.0
          %214 = vst [vmem:[#allocation3 + $0x10] sm:$0xff] 0.0
          %215 = vst [vmem:[#allocation3 + $0x18] sm:$0xff] 0.0
          %216 = vst [vmem:[#allocation3 + $0x20] sm:$0xff] 0.0
          %217 = vst [vmem:[#allocation3 + $0x28] sm:$0xff] 0.0
          %218 = vst [vmem:[#allocation3 + $0x30] sm:$0xff] 0.0
          %219 = vst [vmem:[#allocation3 + $0x38] sm:$0xff] 0.0
          %220 = vst [vmem:[#allocation3 + $0x40] sm:$0xff] 0.0
          %221 = vst [vmem:[#allocation3 + $0x48] sm:$0xff] 0.0
          %222 = vst [vmem:[#allocation3 + $0x50] sm:$0xff] 0.0
          %223 = vst [vmem:[#allocation3 + $0x58] sm:$0xff] 0.0
          %224 = vst [vmem:[#allocation3 + $0x60] sm:$0xff] 0.0
          %225 = vst [vmem:[#allocation3 + $0x68] sm:$0xff] 0.0
          %226 = vst [vmem:[#allocation3 + $0x70] sm:$0xff] 0.0
          %227 = vst [vmem:[#allocation3 + $0x78] sm:$0xff] 0.0
          %228 = vst [vmem:[#allocation5] sm:$0x1] 0.0
          %229 = vst [vmem:[#allocation6] sm:$0x1] 0.0
          %230 = vst [vmem:[#allocation4] sm:$0xff] 0.0
          %231 = vst [vmem:[#allocation4 + $0x8] sm:$0xff] 0.0
          %232 = vst [vmem:[#allocation4 + $0x10] sm:$0xff] 0.0
          %233 = vst [vmem:[#allocation4 + $0x18] sm:$0xff] 0.0
          %234 = vst [vmem:[#allocation4 + $0x20] sm:$0xff] 0.0
          %235 = vst [vmem:[#allocation4 + $0x28] sm:$0xff] 0.0
          %236 = vst [vmem:[#allocation4 + $0x30] sm:$0xff] 0.0
          %237 = vst [vmem:[#allocation4 + $0x38] sm:$0xff] 0.0
          %238 = vst [vmem:[#allocation4 + $0x40] sm:$0xff] 0.0
          %239 = vst [vmem:[#allocation4 + $0x48] sm:$0xff] 0.0
          %240 = vst [vmem:[#allocation4 + $0x50] sm:$0xff] 0.0
          %241 = vst [vmem:[#allocation4 + $0x58] sm:$0xff] 0.0
          %242 = vst [vmem:[#allocation4 + $0x60] sm:$0xff] 0.0
          %243 = vst [vmem:[#allocation4 + $0x68] sm:$0xff] 0.0
          %244 = vst [vmem:[#allocation4 + $0x70] sm:$0xff] 0.0
          %245 = vst [vmem:[#allocation4 + $0x78] sm:$0xff] 0.0
        $region40: #{tpu_custom_call.1} parent=27 // pred_fallthru
          _
        %v246 = vld [vmem:[%s160] sm:$0xff]
        %v247 = vld [vmem:[%s160 + $0x8] sm:$0xff]
        %v248 = vld [vmem:[%s160 + $0x10] sm:$0xff]
        %v249 = vld [vmem:[%s160 + $0x18] sm:$0xff]
        %v250 = vld [vmem:[%s160 + $0x20] sm:$0xff]
        %v251 = vld [vmem:[%s160 + $0x28] sm:$0xff]
        %v252 = vld [vmem:[%s160 + $0x30] sm:$0xff]
        %v253 = vld [vmem:[%s160 + $0x38] sm:$0xff]
        %v254 = vld [vmem:[%s169] sm:$0xff]
        %v255 = vld [vmem:[%s169 + $0x8] sm:$0xff]
        %v256 = vld [vmem:[%s169 + $0x10] sm:$0xff]
        %v257 = vld [vmem:[%s169 + $0x18] sm:$0xff]
        %v258 = vld [vmem:[%s169 + $0x20] sm:$0xff]
        %v259 = vld [vmem:[%s169 + $0x28] sm:$0xff]
        %v260 = vld [vmem:[%s169 + $0x30] sm:$0xff]
        %v261 = vld [vmem:[%s169 + $0x38] sm:$0xff]
        %v262 = vld [vmem:[#allocation2] sm:$0xff]
        %v263 = vld [vmem:[#allocation2 + $0x8] sm:$0xff]
        %v264 = vld [vmem:[#allocation2 + $0x10] sm:$0xff]
        %v265 = vld [vmem:[#allocation2 + $0x18] sm:$0xff]
        %v266 = vld [vmem:[#allocation2 + $0x20] sm:$0xff]
        %v267 = vld [vmem:[#allocation2 + $0x28] sm:$0xff]
        %v268 = vld [vmem:[#allocation2 + $0x30] sm:$0xff]
        %v269 = vld [vmem:[#allocation2 + $0x38] sm:$0xff]
        %v270 = vld [vmem:[#allocation2 + $0x40] sm:$0xff]
        %v271 = vld [vmem:[#allocation2 + $0x48] sm:$0xff]
        %v272 = vld [vmem:[#allocation2 + $0x50] sm:$0xff]
        %v273 = vld [vmem:[#allocation2 + $0x58] sm:$0xff]
        %v274 = vld [vmem:[#allocation2 + $0x60] sm:$0xff]
        %v275 = vld [vmem:[#allocation2 + $0x68] sm:$0xff]
        %v276 = vld [vmem:[#allocation2 + $0x70] sm:$0xff]
        %v277 = vld [vmem:[#allocation2 + $0x78] sm:$0xff]
        %278 = vxpose.xlu0.b32.start [1/16] %v246, 128
        %279 = vxpose.xlu0.b32.cont [2/16] %v247, 128
        %280 = vxpose.xlu0.b32.cont [3/16] %v248, 128
        %281 = vxpose.xlu0.b32.cont [4/16] %v249, 128
        %282 = vxpose.xlu0.b32.cont [5/16] %v250, 128
        %283 = vxpose.xlu0.b32.cont [6/16] %v251, 128
        %284 = vxpose.xlu0.b32.cont [7/16] %v252, 128
        %285 = vxpose.xlu0.b32.cont [8/16] %v253, 128
        %286 = vxpose.xlu0.b32.cont [9/16] 0.0, 128
        %287 = vxpose.xlu0.b32.cont [10/16] 0.0, 128
        %288 = vxpose.xlu0.b32.cont [11/16] 0.0, 128
        %289 = vxpose.xlu0.b32.cont [12/16] 0.0, 128
        %290 = vxpose.xlu0.b32.cont [13/16] 0.0, 128
        %291 = vxpose.xlu0.b32.cont [14/16] 0.0, 128
        %292 = vxpose.xlu0.b32.cont [15/16] 0.0, 128
        %293 = vxpose.xlu0.b32.end [16/16] 0.0, 128
        %v294 = vpop.trf.xlu0
        %v295 = vpop.trf.xlu0
        %v296 = vpop.trf.xlu0
        %v297 = vpop.trf.xlu0
        %v298 = vpop.trf.xlu0
        %v299 = vpop.trf.xlu0
        %v300 = vpop.trf.xlu0
        %v301 = vpop.trf.xlu0
        %v302 = vpop.trf.xlu0
        %v303 = vpop.trf.xlu0
        %v304 = vpop.trf.xlu0
        %v305 = vpop.trf.xlu0
        %v306 = vpop.trf.xlu0
        %v307 = vpop.trf.xlu0
        %v308 = vpop.trf.xlu0
        %v309 = vpop.trf.xlu0
        %vm310 = vcmask 523264
        %v312 = vsel %vm310, %v294, 0
        %v315 = vsel %vm310, %v295, 0
        %v318 = vsel %vm310, %v296, 0
        %v321 = vsel %vm310, %v297, 0
        %v324 = vsel %vm310, %v298, 0
        %v327 = vsel %vm310, %v299, 0
        %v330 = vsel %vm310, %v300, 0
        %v333 = vsel %vm310, %v301, 0
        %v336 = vsel %vm310, %v302, 0
        %v339 = vsel %vm310, %v303, 0
        %v342 = vsel %vm310, %v304, 0
        %v345 = vsel %vm310, %v305, 0
        %v348 = vsel %vm310, %v306, 0
        %v351 = vsel %vm310, %v307, 0
        %v354 = vsel %vm310, %v308, 0
        %v357 = vsel %vm310, %v309, 0
        %359 = vmatprep.subr.mxu0 0.0
        %360 = vmatpush1.msra.mxu0 %v254
        %361 = vmatprep.subr.mxu0 0.0
        %362 = vmatpush1.msra.mxu0 %v255
        %363 = vmatprep.subr.mxu0 0.0
        %364 = vmatpush1.msra.mxu0 %v256
        %365 = vmatprep.subr.mxu0 0.0
        %366 = vmatpush1.msra.mxu0 %v257
        %367 = vmatprep.subr.mxu0 0.0
        %368 = vmatpush1.msra.mxu0 %v258
        %369 = vmatprep.subr.mxu0 0.0
        %370 = vmatpush1.msra.mxu0 %v259
        %371 = vmatprep.subr.mxu0 0.0
        %372 = vmatpush1.msra.mxu0 %v260
        %373 = vmatprep.subr.mxu0 0.0
        %374 = vmatpush1.msra.mxu0 %v261
        %375 = vmatprep.subr.mxu0 0.0
        %376 = vmatpush1.msra.mxu0 0.0
        %377 = vmatprep.subr.mxu0 0.0
        %378 = vmatpush1.msra.mxu0 0.0
        %379 = vmatprep.subr.mxu0 0.0
        %380 = vmatpush1.msra.mxu0 0.0
        %381 = vmatprep.subr.mxu0 0.0
        %382 = vmatpush1.msra.mxu0 0.0
        %383 = vmatprep.subr.mxu0 0.0
        %384 = vmatpush1.msra.mxu0 0.0
        %385 = vmatprep.subr.mxu0 0.0
        %386 = vmatpush1.msra.mxu0 0.0
        %387 = vmatprep.subr.mxu0 0.0
        %388 = vmatpush1.msra.mxu0 0.0
        %389 = vmatprep.subr.mxu0 0.0
        %390 = vmatpush1.msra.mxu0 0.0
        %391 = vmatprep.subr.mxu0 0.0
        %392 = vmatpush1.msra.mxu0 0.0
        %393 = vmatprep.subr.mxu0 0.0
        %394 = vmatpush1.msra.mxu0 0.0
        %395 = vmatprep.subr.mxu0 0.0
        %396 = vmatpush1.msra.mxu0 0.0
        %397 = vmatprep.subr.mxu0 0.0
        %398 = vmatpush1.msra.mxu0 0.0
        %399 = vmatprep.subr.mxu0 0.0
        %400 = vmatpush1.msra.mxu0 0.0
        %401 = vmatprep.subr.mxu0 0.0
        %402 = vmatpush1.msra.mxu0 0.0
        %403 = vmatprep.subr.mxu0 0.0
        %404 = vmatpush1.msra.mxu0 0.0
        %405 = vmatprep.subr.mxu0 0.0
        %406 = vmatpush1.msra.mxu0 0.0
        %407 = vmatprep.subr.mxu0 0.0
        %408 = vmatpush1.msra.mxu0 0.0
        %409 = vmatprep.subr.mxu0 0.0
        %410 = vmatpush1.msra.mxu0 0.0
        %411 = vmatprep.subr.mxu0 0.0
        %412 = vmatpush1.msra.mxu0 0.0
        %413 = vmatprep.subr.mxu0 0.0
        %414 = vmatpush1.msra.mxu0 0.0
        %415 = vmatprep.subr.mxu0 0.0
        %416 = vmatpush1.msra.mxu0 0.0
        %417 = vmatprep.subr.mxu0 0.0
        %418 = vmatpush1.msra.mxu0 0.0
        %419 = vmatprep.subr.mxu0 0.0
        %420 = vmatpush1.msra.mxu0 0.0
        %421 = vmatprep.subr.mxu0 0.0
        %422 = vmatpush1.msra.mxu0 0.0
        %423 = vmatprep.mubr.f32.mxu0 0.0
        %424 = vmatmul.mubr.f32.gmra.mrb[0].mxu0 %v312
        %v425 = vpop.f32.mrb[0].mxu0
        %v426 = vadd.f32 0.0, %v425
        %v427 = vpop.f32.mrb[0].mxu0
        %428 = vmatprep.mubr.f32.mxu0 0.0
        %429 = vmatmul.mubr.f32.gmra.mrb[0].mxu0 %v315
        %v430 = vpop.f32.mrb[0].mxu0
        %v431 = vadd.f32 0.0, %v430
        %v432 = vpop.f32.mrb[0].mxu0
        %433 = vmatprep.mubr.f32.mxu0 0.0
        %434 = vmatmul.mubr.f32.gmra.mrb[0].mxu0 %v318
        %v435 = vpop.f32.mrb[0].mxu0
        %v436 = vadd.f32 0.0, %v435
        %v437 = vpop.f32.mrb[0].mxu0
        %438 = vmatprep.mubr.f32.mxu0 0.0
        %439 = vmatmul.mubr.f32.gmra.mrb[0].mxu0 %v321
        %v440 = vpop.f32.mrb[0].mxu0
        %v441 = vadd.f32 0.0, %v440
        %v442 = vpop.f32.mrb[0].mxu0
        %443 = vmatprep.mubr.f32.mxu0 0.0
        %444 = vmatmul.mubr.f32.gmra.mrb[0].mxu0 %v324
        %v445 = vpop.f32.mrb[0].mxu0
        %v446 = vadd.f32 0.0, %v445
        %v447 = vpop.f32.mrb[0].mxu0
        %448 = vmatprep.mubr.f32.mxu0 0.0
        %449 = vmatmul.mubr.f32.gmra.mrb[0].mxu0 %v327
        %v450 = vpop.f32.mrb[0].mxu0
        %v451 = vadd.f32 0.0, %v450
        %v452 = vpop.f32.mrb[0].mxu0
        %453 = vmatprep.mubr.f32.mxu0 0.0
        %454 = vmatmul.mubr.f32.gmra.mrb[0].mxu0 %v330
        %v455 = vpop.f32.mrb[0].mxu0
        %v456 = vadd.f32 0.0, %v455
        %v457 = vpop.f32.mrb[0].mxu0
        %458 = vmatprep.mubr.f32.mxu0 0.0
        %459 = vmatmul.mubr.f32.gmra.mrb[0].mxu0 %v333
        %v460 = vpop.f32.mrb[0].mxu0
        %v461 = vadd.f32 0.0, %v460
        %v462 = vpop.f32.mrb[0].mxu0
        %463 = vmatprep.mubr.f32.mxu0 0.0
        %464 = vmatmul.mubr.f32.gmra.mrb[0].mxu0 %v336
        %v465 = vpop.f32.mrb[0].mxu0
        %v466 = vadd.f32 0.0, %v465
        %v467 = vpop.f32.mrb[0].mxu0
        %468 = vmatprep.mubr.f32.mxu0 0.0
        %469 = vmatmul.mubr.f32.gmra.mrb[0].mxu0 %v339
        %v470 = vpop.f32.mrb[0].mxu0
        %v471 = vadd.f32 0.0, %v470
        %v472 = vpop.f32.mrb[0].mxu0
        %473 = vmatprep.mubr.f32.mxu0 0.0
        %474 = vmatmul.mubr.f32.gmra.mrb[0].mxu0 %v342
        %v475 = vpop.f32.mrb[0].mxu0
        %v476 = vadd.f32 0.0, %v475
        %v477 = vpop.f32.mrb[0].mxu0
        %478 = vmatprep.mubr.f32.mxu0 0.0
        %479 = vmatmul.mubr.f32.gmra.mrb[0].mxu0 %v345
        %v480 = vpop.f32.mrb[0].mxu0
        %v481 = vadd.f32 0.0, %v480
        %v482 = vpop.f32.mrb[0].mxu0
        %483 = vmatprep.mubr.f32.mxu0 0.0
        %484 = vmatmul.mubr.f32.gmra.mrb[0].mxu0 %v348
        %v485 = vpop.f32.mrb[0].mxu0
        %v486 = vadd.f32 0.0, %v485
        %v487 = vpop.f32.mrb[0].mxu0
        %488 = vmatprep.mubr.f32.mxu0 0.0
        %489 = vmatmul.mubr.f32.gmra.mrb[0].mxu0 %v351
        %v490 = vpop.f32.mrb[0].mxu0
        %v491 = vadd.f32 0.0, %v490
        %v492 = vpop.f32.mrb[0].mxu0
        %493 = vmatprep.mubr.f32.mxu0 0.0
        %494 = vmatmul.mubr.f32.gmra.mrb[0].mxu0 %v354
        %v495 = vpop.f32.mrb[0].mxu0
        %v496 = vadd.f32 0.0, %v495
        %v497 = vpop.f32.mrb[0].mxu0
        %498 = vmatprep.mubr.f32.mxu0 0.0
        %499 = vmatmul.mubr.f32.gmra.mrb[0].mxu0 %v357
        %v500 = vpop.f32.mrb[0].mxu0
        %v501 = vadd.f32 0.0, %v500
        %v502 = vpop.f32.mrb[0].mxu0
        %503 = vdwg.mxu0
        %v504 = vadd.f32 %v262, %v426
        %v505 = vadd.f32 %v263, %v431
        %v506 = vadd.f32 %v264, %v436
        %v507 = vadd.f32 %v265, %v441
        %v508 = vadd.f32 %v266, %v446
        %v509 = vadd.f32 %v267, %v451
        %v510 = vadd.f32 %v268, %v456
        %v511 = vadd.f32 %v269, %v461
        %v512 = vadd.f32 %v270, %v466
        %v513 = vadd.f32 %v271, %v471
        %v514 = vadd.f32 %v272, %v476
        %v515 = vadd.f32 %v273, %v481
        %v516 = vadd.f32 %v274, %v486
        %v517 = vadd.f32 %v275, %v491
        %v518 = vadd.f32 %v276, %v496
        %v519 = vadd.f32 %v277, %v501
        %520 = vst [vmem:[#allocation2] sm:$0xff] %v504
        %521 = vst [vmem:[#allocation2 + $0x8] sm:$0xff] %v505
        %522 = vst [vmem:[#allocation2 + $0x10] sm:$0xff] %v506
        %523 = vst [vmem:[#allocation2 + $0x18] sm:$0xff] %v507
        %524 = vst [vmem:[#allocation2 + $0x20] sm:$0xff] %v508
        %525 = vst [vmem:[#allocation2 + $0x28] sm:$0xff] %v509
        %526 = vst [vmem:[#allocation2 + $0x30] sm:$0xff] %v510
        %527 = vst [vmem:[#allocation2 + $0x38] sm:$0xff] %v511
        %528 = vst [vmem:[#allocation2 + $0x40] sm:$0xff] %v512
        %529 = vst [vmem:[#allocation2 + $0x48] sm:$0xff] %v513
        %530 = vst [vmem:[#allocation2 + $0x50] sm:$0xff] %v514
        %531 = vst [vmem:[#allocation2 + $0x58] sm:$0xff] %v515
        %532 = vst [vmem:[#allocation2 + $0x60] sm:$0xff] %v516
        %533 = vst [vmem:[#allocation2 + $0x68] sm:$0xff] %v517
        %534 = vst [vmem:[#allocation2 + $0x70] sm:$0xff] %v518
        %535 = vst [vmem:[#allocation2 + $0x78] sm:$0xff] %v519
        %v536 = vld [vmem:[#allocation3] sm:$0xff]
        %v537 = vld [vmem:[#allocation3 + $0x8] sm:$0xff]
        %v538 = vld [vmem:[#allocation3 + $0x10] sm:$0xff]
        %v539 = vld [vmem:[#allocation3 + $0x18] sm:$0xff]
        %v540 = vld [vmem:[#allocation3 + $0x20] sm:$0xff]
        %v541 = vld [vmem:[#allocation3 + $0x28] sm:$0xff]
        %v542 = vld [vmem:[#allocation3 + $0x30] sm:$0xff]
        %v543 = vld [vmem:[#allocation3 + $0x38] sm:$0xff]
        %v544 = vld [vmem:[#allocation3 + $0x40] sm:$0xff]
        %v545 = vld [vmem:[#allocation3 + $0x48] sm:$0xff]
        %v546 = vld [vmem:[#allocation3 + $0x50] sm:$0xff]
        %v547 = vld [vmem:[#allocation3 + $0x58] sm:$0xff]
        %v548 = vld [vmem:[#allocation3 + $0x60] sm:$0xff]
        %v549 = vld [vmem:[#allocation3 + $0x68] sm:$0xff]
        %v550 = vld [vmem:[#allocation3 + $0x70] sm:$0xff]
        %v551 = vld [vmem:[#allocation3 + $0x78] sm:$0xff]
        %552 = vxpose.xlu0.b32.start [1/16] %v254, 128
        %553 = vxpose.xlu0.b32.cont [2/16] %v255, 128
        %554 = vxpose.xlu0.b32.cont [3/16] %v256, 128
        %555 = vxpose.xlu0.b32.cont [4/16] %v257, 128
        %556 = vxpose.xlu0.b32.cont [5/16] %v258, 128
        %557 = vxpose.xlu0.b32.cont [6/16] %v259, 128
        %558 = vxpose.xlu0.b32.cont [7/16] %v260, 128
        %559 = vxpose.xlu0.b32.cont [8/16] %v261, 128
        %560 = vxpose.xlu0.b32.cont [9/16] 0.0, 128
        %561 = vxpose.xlu0.b32.cont [10/16] 0.0, 128
        %562 = vxpose.xlu0.b32.cont [11/16] 0.0, 128
        %563 = vxpose.xlu0.b32.cont [12/16] 0.0, 128
        %564 = vxpose.xlu0.b32.cont [13/16] 0.0, 128
        %565 = vxpose.xlu0.b32.cont [14/16] 0.0, 128
        %566 = vxpose.xlu0.b32.cont [15/16] 0.0, 128
        %567 = vxpose.xlu0.b32.end [16/16] 0.0, 128
        %v568 = vpop.trf.xlu0
        %v569 = vpop.trf.xlu0
        %v570 = vpop.trf.xlu0
        %v571 = vpop.trf.xlu0
        %v572 = vpop.trf.xlu0
        %v573 = vpop.trf.xlu0
        %v574 = vpop.trf.xlu0
        %v575 = vpop.trf.xlu0
        %v576 = vpop.trf.xlu0
        %v577 = vpop.trf.xlu0
        %v578 = vpop.trf.xlu0
        %v579 = vpop.trf.xlu0
        %v580 = vpop.trf.xlu0
        %v581 = vpop.trf.xlu0
        %v582 = vpop.trf.xlu0
        %v583 = vpop.trf.xlu0
        %v585 = vsel %vm310, %v568, 0
        %v588 = vsel %vm310, %v569, 0
        %v591 = vsel %vm310, %v570, 0
        %v594 = vsel %vm310, %v571, 0
        %v597 = vsel %vm310, %v572, 0
        %v600 = vsel %vm310, %v573, 0
        %v603 = vsel %vm310, %v574, 0
        %v606 = vsel %vm310, %v575, 0
        %v609 = vsel %vm310, %v576, 0
        %v612 = vsel %vm310, %v577, 0
        %v615 = vsel %vm310, %v578, 0
        %v618 = vsel %vm310, %v579, 0
        %v621 = vsel %vm310, %v580, 0
        %v624 = vsel %vm310, %v581, 0
        %v627 = vsel %vm310, %v582, 0
        %v630 = vsel %vm310, %v583, 0
        %632 = vmatprep.subr.mxu0 0.0
        %633 = vmatpush1.msra.mxu0 %v254
        %634 = vmatprep.subr.mxu0 0.0
        %635 = vmatpush1.msra.mxu0 %v255
        %636 = vmatprep.subr.mxu0 0.0
        %637 = vmatpush1.msra.mxu0 %v256
        %638 = vmatprep.subr.mxu0 0.0
        %639 = vmatpush1.msra.mxu0 %v257
        %640 = vmatprep.subr.mxu0 0.0
        %641 = vmatpush1.msra.mxu0 %v258
        %642 = vmatprep.subr.mxu0 0.0
        %643 = vmatpush1.msra.mxu0 %v259
        %644 = vmatprep.subr.mxu0 0.0
        %645 = vmatpush1.msra.mxu0 %v260
        %646 = vmatprep.subr.mxu0 0.0
        %647 = vmatpush1.msra.mxu0 %v261
        %648 = vmatprep.subr.mxu0 0.0
        %649 = vmatpush1.msra.mxu0 0.0
        %650 = vmatprep.subr.mxu0 0.0
        %651 = vmatpush1.msra.mxu0 0.0
        %652 = vmatprep.subr.mxu0 0.0
        %653 = vmatpush1.msra.mxu0 0.0
        %654 = vmatprep.subr.mxu0 0.0
        %655 = vmatpush1.msra.mxu0 0.0
        %656 = vmatprep.subr.mxu0 0.0
        %657 = vmatpush1.msra.mxu0 0.0
        %658 = vmatprep.subr.mxu0 0.0
        %659 = vmatpush1.msra.mxu0 0.0
        %660 = vmatprep.subr.mxu0 0.0
        %661 = vmatpush1.msra.mxu0 0.0
        %662 = vmatprep.subr.mxu0 0.0
        %663 = vmatpush1.msra.mxu0 0.0
        %664 = vmatprep.subr.mxu0 0.0
        %665 = vmatpush1.msra.mxu0 0.0
        %666 = vmatprep.subr.mxu0 0.0
        %667 = vmatpush1.msra.mxu0 0.0
        %668 = vmatprep.subr.mxu0 0.0
        %669 = vmatpush1.msra.mxu0 0.0
        %670 = vmatprep.subr.mxu0 0.0
        %671 = vmatpush1.msra.mxu0 0.0
        %672 = vmatprep.subr.mxu0 0.0
        %673 = vmatpush1.msra.mxu0 0.0
        %674 = vmatprep.subr.mxu0 0.0
        %675 = vmatpush1.msra.mxu0 0.0
        %676 = vmatprep.subr.mxu0 0.0
        %677 = vmatpush1.msra.mxu0 0.0
        %678 = vmatprep.subr.mxu0 0.0
        %679 = vmatpush1.msra.mxu0 0.0
        %680 = vmatprep.subr.mxu0 0.0
        %681 = vmatpush1.msra.mxu0 0.0
        %682 = vmatprep.subr.mxu0 0.0
        %683 = vmatpush1.msra.mxu0 0.0
        %684 = vmatprep.subr.mxu0 0.0
        %685 = vmatpush1.msra.mxu0 0.0
        %686 = vmatprep.subr.mxu0 0.0
        %687 = vmatpush1.msra.mxu0 0.0
        %688 = vmatprep.subr.mxu0 0.0
        %689 = vmatpush1.msra.mxu0 0.0
        %690 = vmatprep.subr.mxu0 0.0
        %691 = vmatpush1.msra.mxu0 0.0
        %692 = vmatprep.subr.mxu0 0.0
        %693 = vmatpush1.msra.mxu0 0.0
        %694 = vmatprep.subr.mxu0 0.0
        %695 = vmatpush1.msra.mxu0 0.0
        %696 = vmatprep.mubr.f32.mxu0 0.0
        %697 = vmatmul.mubr.f32.gmra.mrb[0].mxu0 %v585
        %v698 = vpop.f32.mrb[0].mxu0
        %v699 = vadd.f32 0.0, %v698
        %v700 = vpop.f32.mrb[0].mxu0
        %701 = vmatprep.mubr.f32.mxu0 0.0
        %702 = vmatmul.mubr.f32.gmra.mrb[0].mxu0 %v588
        %v703 = vpop.f32.mrb[0].mxu0
        %v704 = vadd.f32 0.0, %v703
        %v705 = vpop.f32.mrb[0].mxu0
        %706 = vmatprep.mubr.f32.mxu0 0.0
        %707 = vmatmul.mubr.f32.gmra.mrb[0].mxu0 %v591
        %v708 = vpop.f32.mrb[0].mxu0
        %v709 = vadd.f32 0.0, %v708
        %v710 = vpop.f32.mrb[0].mxu0
        %711 = vmatprep.mubr.f32.mxu0 0.0
        %712 = vmatmul.mubr.f32.gmra.mrb[0].mxu0 %v594
        %v713 = vpop.f32.mrb[0].mxu0
        %v714 = vadd.f32 0.0, %v713
        %v715 = vpop.f32.mrb[0].mxu0
        %716 = vmatprep.mubr.f32.mxu0 0.0
        %717 = vmatmul.mubr.f32.gmra.mrb[0].mxu0 %v597
        %v718 = vpop.f32.mrb[0].mxu0
        %v719 = vadd.f32 0.0, %v718
        %v720 = vpop.f32.mrb[0].mxu0
        %721 = vmatprep.mubr.f32.mxu0 0.0
        %722 = vmatmul.mubr.f32.gmra.mrb[0].mxu0 %v600
        %v723 = vpop.f32.mrb[0].mxu0
        %v724 = vadd.f32 0.0, %v723
        %v725 = vpop.f32.mrb[0].mxu0
        %726 = vmatprep.mubr.f32.mxu0 0.0
        %727 = vmatmul.mubr.f32.gmra.mrb[0].mxu0 %v603
        %v728 = vpop.f32.mrb[0].mxu0
        %v729 = vadd.f32 0.0, %v728
        %v730 = vpop.f32.mrb[0].mxu0
        %731 = vmatprep.mubr.f32.mxu0 0.0
        %732 = vmatmul.mubr.f32.gmra.mrb[0].mxu0 %v606
        %v733 = vpop.f32.mrb[0].mxu0
        %v734 = vadd.f32 0.0, %v733
        %v735 = vpop.f32.mrb[0].mxu0
        %736 = vmatprep.mubr.f32.mxu0 0.0
        %737 = vmatmul.mubr.f32.gmra.mrb[0].mxu0 %v609
        %v738 = vpop.f32.mrb[0].mxu0
        %v739 = vadd.f32 0.0, %v738
        %v740 = vpop.f32.mrb[0].mxu0
        %741 = vmatprep.mubr.f32.mxu0 0.0
        %742 = vmatmul.mubr.f32.gmra.mrb[0].mxu0 %v612
        %v743 = vpop.f32.mrb[0].mxu0
        %v744 = vadd.f32 0.0, %v743
        %v745 = vpop.f32.mrb[0].mxu0
        %746 = vmatprep.mubr.f32.mxu0 0.0
        %747 = vmatmul.mubr.f32.gmra.mrb[0].mxu0 %v615
        %v748 = vpop.f32.mrb[0].mxu0
        %v749 = vadd.f32 0.0, %v748
        %v750 = vpop.f32.mrb[0].mxu0
        %751 = vmatprep.mubr.f32.mxu0 0.0
        %752 = vmatmul.mubr.f32.gmra.mrb[0].mxu0 %v618
        %v753 = vpop.f32.mrb[0].mxu0
        %v754 = vadd.f32 0.0, %v753
        %v755 = vpop.f32.mrb[0].mxu0
        %756 = vmatprep.mubr.f32.mxu0 0.0
        %757 = vmatmul.mubr.f32.gmra.mrb[0].mxu0 %v621
        %v758 = vpop.f32.mrb[0].mxu0
        %v759 = vadd.f32 0.0, %v758
        %v760 = vpop.f32.mrb[0].mxu0
        %761 = vmatprep.mubr.f32.mxu0 0.0
        %762 = vmatmul.mubr.f32.gmra.mrb[0].mxu0 %v624
        %v763 = vpop.f32.mrb[0].mxu0
        %v764 = vadd.f32 0.0, %v763
        %v765 = vpop.f32.mrb[0].mxu0
        %766 = vmatprep.mubr.f32.mxu0 0.0
        %767 = vmatmul.mubr.f32.gmra.mrb[0].mxu0 %v627
        %v768 = vpop.f32.mrb[0].mxu0
        %v769 = vadd.f32 0.0, %v768
        %v770 = vpop.f32.mrb[0].mxu0
        %771 = vmatprep.mubr.f32.mxu0 0.0
        %772 = vmatmul.mubr.f32.gmra.mrb[0].mxu0 %v630
        %v773 = vpop.f32.mrb[0].mxu0
        %v774 = vadd.f32 0.0, %v773
        %v775 = vpop.f32.mrb[0].mxu0
        %776 = vdwg.mxu0
        %v777 = vadd.f32 %v536, %v699
        %v778 = vadd.f32 %v537, %v704
        %v779 = vadd.f32 %v538, %v709
        %v780 = vadd.f32 %v539, %v714
        %v781 = vadd.f32 %v540, %v719
        %v782 = vadd.f32 %v541, %v724
        %v783 = vadd.f32 %v542, %v729
        %v784 = vadd.f32 %v543, %v734
        %v785 = vadd.f32 %v544, %v739
        %v786 = vadd.f32 %v545, %v744
        %v787 = vadd.f32 %v546, %v749
        %v788 = vadd.f32 %v547, %v754
        %v789 = vadd.f32 %v548, %v759
        %v790 = vadd.f32 %v549, %v764
        %v791 = vadd.f32 %v550, %v769
        %v792 = vadd.f32 %v551, %v774
        %793 = vst [vmem:[#allocation3] sm:$0xff] %v777
        %794 = vst [vmem:[#allocation3 + $0x8] sm:$0xff] %v778
        %795 = vst [vmem:[#allocation3 + $0x10] sm:$0xff] %v779
        %796 = vst [vmem:[#allocation3 + $0x18] sm:$0xff] %v780
        %797 = vst [vmem:[#allocation3 + $0x20] sm:$0xff] %v781
        %798 = vst [vmem:[#allocation3 + $0x28] sm:$0xff] %v782
        %799 = vst [vmem:[#allocation3 + $0x30] sm:$0xff] %v783
        %800 = vst [vmem:[#allocation3 + $0x38] sm:$0xff] %v784
        %801 = vst [vmem:[#allocation3 + $0x40] sm:$0xff] %v785
        %802 = vst [vmem:[#allocation3 + $0x48] sm:$0xff] %v786
        %803 = vst [vmem:[#allocation3 + $0x50] sm:$0xff] %v787
        %804 = vst [vmem:[#allocation3 + $0x58] sm:$0xff] %v788
        %805 = vst [vmem:[#allocation3 + $0x60] sm:$0xff] %v789
        %806 = vst [vmem:[#allocation3 + $0x68] sm:$0xff] %v790
        %807 = vst [vmem:[#allocation3 + $0x70] sm:$0xff] %v791
        %808 = vst [vmem:[#allocation3 + $0x78] sm:$0xff] %v792
        %v809 = vld [vmem:[#allocation4] sm:$0xff]
        %v810 = vld [vmem:[#allocation4 + $0x8] sm:$0xff]
        %v811 = vld [vmem:[#allocation4 + $0x10] sm:$0xff]
        %v812 = vld [vmem:[#allocation4 + $0x18] sm:$0xff]
        %v813 = vld [vmem:[#allocation4 + $0x20] sm:$0xff]
        %v814 = vld [vmem:[#allocation4 + $0x28] sm:$0xff]
        %v815 = vld [vmem:[#allocation4 + $0x30] sm:$0xff]
        %v816 = vld [vmem:[#allocation4 + $0x38] sm:$0xff]
        %v817 = vld [vmem:[#allocation4 + $0x40] sm:$0xff]
        %v818 = vld [vmem:[#allocation4 + $0x48] sm:$0xff]
        %v819 = vld [vmem:[#allocation4 + $0x50] sm:$0xff]
        %v820 = vld [vmem:[#allocation4 + $0x58] sm:$0xff]
        %v821 = vld [vmem:[#allocation4 + $0x60] sm:$0xff]
        %v822 = vld [vmem:[#allocation4 + $0x68] sm:$0xff]
        %v823 = vld [vmem:[#allocation4 + $0x70] sm:$0xff]
        %v824 = vld [vmem:[#allocation4 + $0x78] sm:$0xff]
        %825 = vmatprep.subr.mxu0 0.0
        %826 = vmatpush1.msra.mxu0 %v246
        %827 = vmatprep.subr.mxu0 0.0
        %828 = vmatpush1.msra.mxu0 %v247
        %829 = vmatprep.subr.mxu0 0.0
        %830 = vmatpush1.msra.mxu0 %v248
        %831 = vmatprep.subr.mxu0 0.0
        %832 = vmatpush1.msra.mxu0 %v249
        %833 = vmatprep.subr.mxu0 0.0
        %834 = vmatpush1.msra.mxu0 %v250
        %835 = vmatprep.subr.mxu0 0.0
        %836 = vmatpush1.msra.mxu0 %v251
        %837 = vmatprep.subr.mxu0 0.0
        %838 = vmatpush1.msra.mxu0 %v252
        %839 = vmatprep.subr.mxu0 0.0
        %840 = vmatpush1.msra.mxu0 %v253
        %841 = vmatprep.subr.mxu0 0.0
        %842 = vmatpush1.msra.mxu0 0.0
        %843 = vmatprep.subr.mxu0 0.0
        %844 = vmatpush1.msra.mxu0 0.0
        %845 = vmatprep.subr.mxu0 0.0
        %846 = vmatpush1.msra.mxu0 0.0
        %847 = vmatprep.subr.mxu0 0.0
        %848 = vmatpush1.msra.mxu0 0.0
        %849 = vmatprep.subr.mxu0 0.0
        %850 = vmatpush1.msra.mxu0 0.0
        %851 = vmatprep.subr.mxu0 0.0
        %852 = vmatpush1.msra.mxu0 0.0
        %853 = vmatprep.subr.mxu0 0.0
        %854 = vmatpush1.msra.mxu0 0.0
        %855 = vmatprep.subr.mxu0 0.0
        %856 = vmatpush1.msra.mxu0 0.0
        %857 = vmatprep.subr.mxu0 0.0
        %858 = vmatpush1.msra.mxu0 0.0
        %859 = vmatprep.subr.mxu0 0.0
        %860 = vmatpush1.msra.mxu0 0.0
        %861 = vmatprep.subr.mxu0 0.0
        %862 = vmatpush1.msra.mxu0 0.0
        %863 = vmatprep.subr.mxu0 0.0
        %864 = vmatpush1.msra.mxu0 0.0
        %865 = vmatprep.subr.mxu0 0.0
        %866 = vmatpush1.msra.mxu0 0.0
        %867 = vmatprep.subr.mxu0 0.0
        %868 = vmatpush1.msra.mxu0 0.0
        %869 = vmatprep.subr.mxu0 0.0
        %870 = vmatpush1.msra.mxu0 0.0
        %871 = vmatprep.subr.mxu0 0.0
        %872 = vmatpush1.msra.mxu0 0.0
        %873 = vmatprep.subr.mxu0 0.0
        %874 = vmatpush1.msra.mxu0 0.0
        %875 = vmatprep.subr.mxu0 0.0
        %876 = vmatpush1.msra.mxu0 0.0
        %877 = vmatprep.subr.mxu0 0.0
        %878 = vmatpush1.msra.mxu0 0.0
        %879 = vmatprep.subr.mxu0 0.0
        %880 = vmatpush1.msra.mxu0 0.0
        %881 = vmatprep.subr.mxu0 0.0
        %882 = vmatpush1.msra.mxu0 0.0
        %883 = vmatprep.subr.mxu0 0.0
        %884 = vmatpush1.msra.mxu0 0.0
        %885 = vmatprep.subr.mxu0 0.0
        %886 = vmatpush1.msra.mxu0 0.0
        %887 = vmatprep.subr.mxu0 0.0
        %888 = vmatpush1.msra.mxu0 0.0
        %889 = vmatprep.mubr.f32.mxu0 0.0
        %890 = vmatmul.mubr.f32.gmra.mrb[0].mxu0 %v312
        %v891 = vpop.f32.mrb[0].mxu0
        %v892 = vadd.f32 0.0, %v891
        %v893 = vpop.f32.mrb[0].mxu0
        %894 = vmatprep.mubr.f32.mxu0 0.0
        %895 = vmatmul.mubr.f32.gmra.mrb[0].mxu0 %v315
        %v896 = vpop.f32.mrb[0].mxu0
        %v897 = vadd.f32 0.0, %v896
        %v898 = vpop.f32.mrb[0].mxu0
        %899 = vmatprep.mubr.f32.mxu0 0.0
        %900 = vmatmul.mubr.f32.gmra.mrb[0].mxu0 %v318
        %v901 = vpop.f32.mrb[0].mxu0
        %v902 = vadd.f32 0.0, %v901
        %v903 = vpop.f32.mrb[0].mxu0
        %904 = vmatprep.mubr.f32.mxu0 0.0
        %905 = vmatmul.mubr.f32.gmra.mrb[0].mxu0 %v321
        %v906 = vpop.f32.mrb[0].mxu0
        %v907 = vadd.f32 0.0, %v906
        %v908 = vpop.f32.mrb[0].mxu0
        %909 = vmatprep.mubr.f32.mxu0 0.0
        %910 = vmatmul.mubr.f32.gmra.mrb[0].mxu0 %v324
        %v911 = vpop.f32.mrb[0].mxu0
        %v912 = vadd.f32 0.0, %v911
        %v913 = vpop.f32.mrb[0].mxu0
        %914 = vmatprep.mubr.f32.mxu0 0.0
        %915 = vmatmul.mubr.f32.gmra.mrb[0].mxu0 %v327
        %v916 = vpop.f32.mrb[0].mxu0
        %v917 = vadd.f32 0.0, %v916
        %v918 = vpop.f32.mrb[0].mxu0
        %919 = vmatprep.mubr.f32.mxu0 0.0
        %920 = vmatmul.mubr.f32.gmra.mrb[0].mxu0 %v330
        %v921 = vpop.f32.mrb[0].mxu0
        %v922 = vadd.f32 0.0, %v921
        %v923 = vpop.f32.mrb[0].mxu0
        %924 = vmatprep.mubr.f32.mxu0 0.0
        %925 = vmatmul.mubr.f32.gmra.mrb[0].mxu0 %v333
        %v926 = vpop.f32.mrb[0].mxu0
        %v927 = vadd.f32 0.0, %v926
        %v928 = vpop.f32.mrb[0].mxu0
        %929 = vmatprep.mubr.f32.mxu0 0.0
        %930 = vmatmul.mubr.f32.gmra.mrb[0].mxu0 %v336
        %v931 = vpop.f32.mrb[0].mxu0
        %v932 = vadd.f32 0.0, %v931
        %v933 = vpop.f32.mrb[0].mxu0
        %934 = vmatprep.mubr.f32.mxu0 0.0
        %935 = vmatmul.mubr.f32.gmra.mrb[0].mxu0 %v339
        %v936 = vpop.f32.mrb[0].mxu0
        %v937 = vadd.f32 0.0, %v936
        %v938 = vpop.f32.mrb[0].mxu0
        %939 = vmatprep.mubr.f32.mxu0 0.0
        %940 = vmatmul.mubr.f32.gmra.mrb[0].mxu0 %v342
        %v941 = vpop.f32.mrb[0].mxu0
        %v942 = vadd.f32 0.0, %v941
        %v943 = vpop.f32.mrb[0].mxu0
        %944 = vmatprep.mubr.f32.mxu0 0.0
        %945 = vmatmul.mubr.f32.gmra.mrb[0].mxu0 %v345
        %v946 = vpop.f32.mrb[0].mxu0
        %v947 = vadd.f32 0.0, %v946
        %v948 = vpop.f32.mrb[0].mxu0
        %949 = vmatprep.mubr.f32.mxu0 0.0
        %950 = vmatmul.mubr.f32.gmra.mrb[0].mxu0 %v348
        %v951 = vpop.f32.mrb[0].mxu0
        %v952 = vadd.f32 0.0, %v951
        %v953 = vpop.f32.mrb[0].mxu0
        %954 = vmatprep.mubr.f32.mxu0 0.0
        %955 = vmatmul.mubr.f32.gmra.mrb[0].mxu0 %v351
        %v956 = vpop.f32.mrb[0].mxu0
        %v957 = vadd.f32 0.0, %v956
        %v958 = vpop.f32.mrb[0].mxu0
        %959 = vmatprep.mubr.f32.mxu0 0.0
        %960 = vmatmul.mubr.f32.gmra.mrb[0].mxu0 %v354
        %v961 = vpop.f32.mrb[0].mxu0
        %v962 = vadd.f32 0.0, %v961
        %v963 = vpop.f32.mrb[0].mxu0
        %964 = vmatprep.mubr.f32.mxu0 0.0
        %965 = vmatmul.mubr.f32.gmra.mrb[0].mxu0 %v357
        %v966 = vpop.f32.mrb[0].mxu0
        %v967 = vadd.f32 0.0, %v966
        %v968 = vpop.f32.mrb[0].mxu0
        %969 = vdwg.mxu0
        %v970 = vadd.f32 %v809, %v892
        %v971 = vadd.f32 %v810, %v897
        %v972 = vadd.f32 %v811, %v902
        %v973 = vadd.f32 %v812, %v907
        %v974 = vadd.f32 %v813, %v912
        %v975 = vadd.f32 %v814, %v917
        %v976 = vadd.f32 %v815, %v922
        %v977 = vadd.f32 %v816, %v927
        %v978 = vadd.f32 %v817, %v932
        %v979 = vadd.f32 %v818, %v937
        %v980 = vadd.f32 %v819, %v942
        %v981 = vadd.f32 %v820, %v947
        %v982 = vadd.f32 %v821, %v952
        %v983 = vadd.f32 %v822, %v957
        %v984 = vadd.f32 %v823, %v962
        %v985 = vadd.f32 %v824, %v967
        %986 = vst [vmem:[#allocation4] sm:$0xff] %v970
        %987 = vst [vmem:[#allocation4 + $0x8] sm:$0xff] %v971
        %988 = vst [vmem:[#allocation4 + $0x10] sm:$0xff] %v972
        %989 = vst [vmem:[#allocation4 + $0x18] sm:$0xff] %v973
        %990 = vst [vmem:[#allocation4 + $0x20] sm:$0xff] %v974
        %991 = vst [vmem:[#allocation4 + $0x28] sm:$0xff] %v975
        %992 = vst [vmem:[#allocation4 + $0x30] sm:$0xff] %v976
        %993 = vst [vmem:[#allocation4 + $0x38] sm:$0xff] %v977
        %994 = vst [vmem:[#allocation4 + $0x40] sm:$0xff] %v978
        %995 = vst [vmem:[#allocation4 + $0x48] sm:$0xff] %v979
        %996 = vst [vmem:[#allocation4 + $0x50] sm:$0xff] %v980
        %997 = vst [vmem:[#allocation4 + $0x58] sm:$0xff] %v981
        %998 = vst [vmem:[#allocation4 + $0x60] sm:$0xff] %v982
        %999 = vst [vmem:[#allocation4 + $0x68] sm:$0xff] %v983
        %1000 = vst [vmem:[#allocation4 + $0x70] sm:$0xff] %v984
        %1001 = vst [vmem:[#allocation4 + $0x78] sm:$0xff] %v985
        %v1002 = vld [vmem:[#allocation5] sm:$0x1]
        %v1003 = vadd.f32 %v246, %v247
        %v1004 = vadd.f32 %v1003, %v248
        %v1005 = vadd.f32 %v1004, %v249
        %v1006 = vadd.f32 %v1005, %v250
        %v1007 = vadd.f32 %v1006, %v251
        %v1008 = vadd.f32 %v1007, %v252
        %v1009 = vadd.f32 %v1008, %v253
        %v1010 = vrot.slane %v1009, 4
        %v1011 = vadd.f32 %v1009, %v1010
        %v1012 = vrot.slane %v1011, 2
        %v1013 = vadd.f32 %v1011, %v1012
        %v1014 = vrot.slane %v1013, 1
        %v1015 = vadd.f32 %v1013, %v1014
        %v1016 = vadd.f32 %v1002, %v1015
        %1017 = vst [vmem:[#allocation5] sm:$0x1] %v1016
        %v1018 = vld [vmem:[#allocation6] sm:$0x1]
        %v1019 = vadd.f32 %v254, %v255
        %v1020 = vadd.f32 %v1019, %v256
        %v1021 = vadd.f32 %v1020, %v257
        %v1022 = vadd.f32 %v1021, %v258
        %v1023 = vadd.f32 %v1022, %v259
        %v1024 = vadd.f32 %v1023, %v260
        %v1025 = vadd.f32 %v1024, %v261
        %v1026 = vrot.slane %v1025, 4
        %v1027 = vadd.f32 %v1025, %v1026
        %v1028 = vrot.slane %v1027, 2
        %v1029 = vadd.f32 %v1027, %v1028
        %v1030 = vrot.slane %v1029, 1
        %v1031 = vadd.f32 %v1029, %v1030
        %v1032 = vadd.f32 %v1018, %v1031
        %1033 = vst [vmem:[#allocation6] sm:$0x1] %v1032
        %p1034 = scmp.eq.s32.totalorder %s20, 3
        // Predicated region
        $region41: #{tpu_custom_call.1} parent=27 // pred_check
          %p1035 = pneg %p1034
        $region42: #{tpu_custom_call.1} parent=27 // pred_check_branch
          %1037 = sbr.rel (%p1035) target = $region44
        $region43: #{tpu_custom_call.1} parent=27 // pred_region
          %v1038 = vld [vmem:[#allocation5] sm:$0x1]
          %v1039 = vld [vmem:[#allocation6] sm:$0x1]
          %v1040 = vld [vmem:[#allocation2] sm:$0xff]
          %v1041 = vld [vmem:[#allocation2 + $0x8] sm:$0xff]
          %v1042 = vld [vmem:[#allocation2 + $0x10] sm:$0xff]
          %v1043 = vld [vmem:[#allocation2 + $0x18] sm:$0xff]
          %v1044 = vld [vmem:[#allocation2 + $0x20] sm:$0xff]
          %v1045 = vld [vmem:[#allocation2 + $0x28] sm:$0xff]
          %v1046 = vld [vmem:[#allocation2 + $0x30] sm:$0xff]
          %v1047 = vld [vmem:[#allocation2 + $0x38] sm:$0xff]
          %v1048 = vld [vmem:[#allocation2 + $0x40] sm:$0xff]
          %v1049 = vld [vmem:[#allocation2 + $0x48] sm:$0xff]
          %v1050 = vld [vmem:[#allocation2 + $0x50] sm:$0xff]
          %v1051 = vld [vmem:[#allocation2 + $0x58] sm:$0xff]
          %v1052 = vld [vmem:[#allocation2 + $0x60] sm:$0xff]
          %v1053 = vld [vmem:[#allocation2 + $0x68] sm:$0xff]
          %v1054 = vld [vmem:[#allocation2 + $0x70] sm:$0xff]
          %v1055 = vld [vmem:[#allocation2 + $0x78] sm:$0xff]
          %1056 = vxpose.xlu0.b32.start [1/16] %v1038, 128
          %1057 = vxpose.xlu0.b32.cont [2/16] 0.0, 128
          %1058 = vxpose.xlu0.b32.cont [3/16] 0.0, 128
          %1059 = vxpose.xlu0.b32.cont [4/16] 0.0, 128
          %1060 = vxpose.xlu0.b32.cont [5/16] 0.0, 128
          %1061 = vxpose.xlu0.b32.cont [6/16] 0.0, 128
          %1062 = vxpose.xlu0.b32.cont [7/16] 0.0, 128
          %1063 = vxpose.xlu0.b32.cont [8/16] 0.0, 128
          %1064 = vxpose.xlu0.b32.cont [9/16] 0.0, 128
          %1065 = vxpose.xlu0.b32.cont [10/16] 0.0, 128
          %1066 = vxpose.xlu0.b32.cont [11/16] 0.0, 128
          %1067 = vxpose.xlu0.b32.cont [12/16] 0.0, 128
          %1068 = vxpose.xlu0.b32.cont [13/16] 0.0, 128
          %1069 = vxpose.xlu0.b32.cont [14/16] 0.0, 128
          %1070 = vxpose.xlu0.b32.cont [15/16] 0.0, 128
          %1071 = vxpose.xlu0.b32.end [16/16] 0.0, 128
          %v1072 = vpop.trf.xlu0
          %v1073 = vpop.trf.xlu0
          %v1074 = vpop.trf.xlu0
          %v1075 = vpop.trf.xlu0
          %v1076 = vpop.trf.xlu0
          %v1077 = vpop.trf.xlu0
          %v1078 = vpop.trf.xlu0
          %v1079 = vpop.trf.xlu0
          %v1080 = vpop.trf.xlu0
          %v1081 = vpop.trf.xlu0
          %v1082 = vpop.trf.xlu0
          %v1083 = vpop.trf.xlu0
          %v1084 = vpop.trf.xlu0
          %v1085 = vpop.trf.xlu0
          %v1086 = vpop.trf.xlu0
          %v1087 = vpop.trf.xlu0
          %vm1088 = vcmask 7168
          %v1090 = vsel %vm1088, %v1072, 0
          %v1093 = vsel %vm1088, %v1073, 0
          %v1096 = vsel %vm1088, %v1074, 0
          %v1099 = vsel %vm1088, %v1075, 0
          %v1102 = vsel %vm1088, %v1076, 0
          %v1105 = vsel %vm1088, %v1077, 0
          %v1108 = vsel %vm1088, %v1078, 0
          %v1111 = vsel %vm1088, %v1079, 0
          %v1114 = vsel %vm1088, %v1080, 0
          %v1117 = vsel %vm1088, %v1081, 0
          %v1120 = vsel %vm1088, %v1082, 0
          %v1123 = vsel %vm1088, %v1083, 0
          %v1126 = vsel %vm1088, %v1084, 0
          %v1129 = vsel %vm1088, %v1085, 0
          %v1132 = vsel %vm1088, %v1086, 0
          %v1135 = vsel %vm1088, %v1087, 0
          %vm1137 = vcmask 1040384
          %v1139 = vsel %vm1137, %v1039, 0
          %1141 = vmatprep.subr.mxu0 0.0
          %1142 = vmatpush1.msra.mxu0 %v1139
          %1143 = vmatprep.subr.mxu0 0.0
          %1144 = vmatpush1.msra.mxu0 0.0
          %1145 = vmatprep.subr.mxu0 0.0
          %1146 = vmatpush1.msra.mxu0 0.0
          %1147 = vmatprep.subr.mxu0 0.0
          %1148 = vmatpush1.msra.mxu0 0.0
          %1149 = vmatprep.subr.mxu0 0.0
          %1150 = vmatpush1.msra.mxu0 0.0
          %1151 = vmatprep.subr.mxu0 0.0
          %1152 = vmatpush1.msra.mxu0 0.0
          %1153 = vmatprep.subr.mxu0 0.0
          %1154 = vmatpush1.msra.mxu0 0.0
          %1155 = vmatprep.subr.mxu0 0.0
          %1156 = vmatpush1.msra.mxu0 0.0
          %1157 = vmatprep.subr.mxu0 0.0
          %1158 = vmatpush1.msra.mxu0 0.0
          %1159 = vmatprep.subr.mxu0 0.0
          %1160 = vmatpush1.msra.mxu0 0.0
          %1161 = vmatprep.subr.mxu0 0.0
          %1162 = vmatpush1.msra.mxu0 0.0
          %1163 = vmatprep.subr.mxu0 0.0
          %1164 = vmatpush1.msra.mxu0 0.0
          %1165 = vmatprep.subr.mxu0 0.0
          %1166 = vmatpush1.msra.mxu0 0.0
          %1167 = vmatprep.subr.mxu0 0.0
          %1168 = vmatpush1.msra.mxu0 0.0
          %1169 = vmatprep.subr.mxu0 0.0
          %1170 = vmatpush1.msra.mxu0 0.0
          %1171 = vmatprep.subr.mxu0 0.0
          %1172 = vmatpush1.msra.mxu0 0.0
          %1173 = vmatprep.subr.mxu0 0.0
          %1174 = vmatpush1.msra.mxu0 0.0
          %1175 = vmatprep.subr.mxu0 0.0
          %1176 = vmatpush1.msra.mxu0 0.0
          %1177 = vmatprep.subr.mxu0 0.0
          %1178 = vmatpush1.msra.mxu0 0.0
          %1179 = vmatprep.subr.mxu0 0.0
          %1180 = vmatpush1.msra.mxu0 0.0
          %1181 = vmatprep.subr.mxu0 0.0
          %1182 = vmatpush1.msra.mxu0 0.0
          %1183 = vmatprep.subr.mxu0 0.0
          %1184 = vmatpush1.msra.mxu0 0.0
          %1185 = vmatprep.subr.mxu0 0.0
          %1186 = vmatpush1.msra.mxu0 0.0
          %1187 = vmatprep.subr.mxu0 0.0
          %1188 = vmatpush1.msra.mxu0 0.0
          %1189 = vmatprep.subr.mxu0 0.0
          %1190 = vmatpush1.msra.mxu0 0.0
          %1191 = vmatprep.subr.mxu0 0.0
          %1192 = vmatpush1.msra.mxu0 0.0
          %1193 = vmatprep.subr.mxu0 0.0
          %1194 = vmatpush1.msra.mxu0 0.0
          %1195 = vmatprep.subr.mxu0 0.0
          %1196 = vmatpush1.msra.mxu0 0.0
          %1197 = vmatprep.subr.mxu0 0.0
          %1198 = vmatpush1.msra.mxu0 0.0
          %1199 = vmatprep.subr.mxu0 0.0
          %1200 = vmatpush1.msra.mxu0 0.0
          %1201 = vmatprep.subr.mxu0 0.0
          %1202 = vmatpush1.msra.mxu0 0.0
          %1203 = vmatprep.subr.mxu0 0.0
          %1204 = vmatpush1.msra.mxu0 0.0
          %1205 = vmatprep.mubr.f32.mxu0 0.0
          %1206 = vmatmul.mubr.f32.gmra.mrb[0].mxu0 %v1090
          %v1207 = vpop.f32.mrb[0].mxu0
          %v1208 = vadd.f32 0.0, %v1207
          %v1209 = vpop.f32.mrb[0].mxu0
          %1210 = vmatprep.mubr.f32.mxu0 0.0
          %1211 = vmatmul.mubr.f32.gmra.mrb[0].mxu0 %v1093
          %v1212 = vpop.f32.mrb[0].mxu0
          %v1213 = vadd.f32 0.0, %v1212
          %v1214 = vpop.f32.mrb[0].mxu0
          %1215 = vmatprep.mubr.f32.mxu0 0.0
          %1216 = vmatmul.mubr.f32.gmra.mrb[0].mxu0 %v1096
          %v1217 = vpop.f32.mrb[0].mxu0
          %v1218 = vadd.f32 0.0, %v1217
          %v1219 = vpop.f32.mrb[0].mxu0
          %1220 = vmatprep.mubr.f32.mxu0 0.0
          %1221 = vmatmul.mubr.f32.gmra.mrb[0].mxu0 %v1099
          %v1222 = vpop.f32.mrb[0].mxu0
          %v1223 = vadd.f32 0.0, %v1222
          %v1224 = vpop.f32.mrb[0].mxu0
          %1225 = vmatprep.mubr.f32.mxu0 0.0
          %1226 = vmatmul.mubr.f32.gmra.mrb[0].mxu0 %v1102
          %v1227 = vpop.f32.mrb[0].mxu0
          %v1228 = vadd.f32 0.0, %v1227
          %v1229 = vpop.f32.mrb[0].mxu0
          %1230 = vmatprep.mubr.f32.mxu0 0.0
          %1231 = vmatmul.mubr.f32.gmra.mrb[0].mxu0 %v1105
          %v1232 = vpop.f32.mrb[0].mxu0
          %v1233 = vadd.f32 0.0, %v1232
          %v1234 = vpop.f32.mrb[0].mxu0
          %1235 = vmatprep.mubr.f32.mxu0 0.0
          %1236 = vmatmul.mubr.f32.gmra.mrb[0].mxu0 %v1108
          %v1237 = vpop.f32.mrb[0].mxu0
          %v1238 = vadd.f32 0.0, %v1237
          %v1239 = vpop.f32.mrb[0].mxu0
          %1240 = vmatprep.mubr.f32.mxu0 0.0
          %1241 = vmatmul.mubr.f32.gmra.mrb[0].mxu0 %v1111
          %v1242 = vpop.f32.mrb[0].mxu0
          %v1243 = vadd.f32 0.0, %v1242
          %v1244 = vpop.f32.mrb[0].mxu0
          %1245 = vmatprep.mubr.f32.mxu0 0.0
          %1246 = vmatmul.mubr.f32.gmra.mrb[0].mxu0 %v1114
          %v1247 = vpop.f32.mrb[0].mxu0
          %v1248 = vadd.f32 0.0, %v1247
          %v1249 = vpop.f32.mrb[0].mxu0
          %1250 = vmatprep.mubr.f32.mxu0 0.0
          %1251 = vmatmul.mubr.f32.gmra.mrb[0].mxu0 %v1117
          %v1252 = vpop.f32.mrb[0].mxu0
          %v1253 = vadd.f32 0.0, %v1252
          %v1254 = vpop.f32.mrb[0].mxu0
          %1255 = vmatprep.mubr.f32.mxu0 0.0
          %1256 = vmatmul.mubr.f32.gmra.mrb[0].mxu0 %v1120
          %v1257 = vpop.f32.mrb[0].mxu0
          %v1258 = vadd.f32 0.0, %v1257
          %v1259 = vpop.f32.mrb[0].mxu0
          %1260 = vmatprep.mubr.f32.mxu0 0.0
          %1261 = vmatmul.mubr.f32.gmra.mrb[0].mxu0 %v1123
          %v1262 = vpop.f32.mrb[0].mxu0
          %v1263 = vadd.f32 0.0, %v1262
          %v1264 = vpop.f32.mrb[0].mxu0
          %1265 = vmatprep.mubr.f32.mxu0 0.0
          %1266 = vmatmul.mubr.f32.gmra.mrb[0].mxu0 %v1126
          %v1267 = vpop.f32.mrb[0].mxu0
          %v1268 = vadd.f32 0.0, %v1267
          %v1269 = vpop.f32.mrb[0].mxu0
          %1270 = vmatprep.mubr.f32.mxu0 0.0
          %1271 = vmatmul.mubr.f32.gmra.mrb[0].mxu0 %v1129
          %v1272 = vpop.f32.mrb[0].mxu0
          %v1273 = vadd.f32 0.0, %v1272
          %v1274 = vpop.f32.mrb[0].mxu0
          %1275 = vmatprep.mubr.f32.mxu0 0.0
          %1276 = vmatmul.mubr.f32.gmra.mrb[0].mxu0 %v1132
          %v1277 = vpop.f32.mrb[0].mxu0
          %v1278 = vadd.f32 0.0, %v1277
          %v1279 = vpop.f32.mrb[0].mxu0
          %1280 = vmatprep.mubr.f32.mxu0 0.0
          %1281 = vmatmul.mubr.f32.gmra.mrb[0].mxu0 %v1135
          %v1282 = vpop.f32.mrb[0].mxu0
          %v1283 = vadd.f32 0.0, %v1282
          %v1284 = vpop.f32.mrb[0].mxu0
          %1285 = vdwg.mxu0
          %v1286 = vmul.f32 %v1208, 0.005
          %v1287 = vmul.f32 %v1213, 0.005
          %v1288 = vmul.f32 %v1218, 0.005
          %v1289 = vmul.f32 %v1223, 0.005
          %v1290 = vmul.f32 %v1228, 0.005
          %v1291 = vmul.f32 %v1233, 0.005
          %v1292 = vmul.f32 %v1238, 0.005
          %v1293 = vmul.f32 %v1243, 0.005
          %v1294 = vmul.f32 %v1248, 0.005
          %v1295 = vmul.f32 %v1253, 0.005
          %v1296 = vmul.f32 %v1258, 0.005
          %v1297 = vmul.f32 %v1263, 0.005
          %v1298 = vmul.f32 %v1268, 0.005
          %v1299 = vmul.f32 %v1273, 0.005
          %v1300 = vmul.f32 %v1278, 0.005
          %v1301 = vmul.f32 %v1283, 0.005
          %v1302 = vsub.f32 %v1040, %v1286
          %v1303 = vsub.f32 %v1041, %v1287
          %v1304 = vsub.f32 %v1042, %v1288
          %v1305 = vsub.f32 %v1043, %v1289
          %v1306 = vsub.f32 %v1044, %v1290
          %v1307 = vsub.f32 %v1045, %v1291
          %v1308 = vsub.f32 %v1046, %v1292
          %v1309 = vsub.f32 %v1047, %v1293
          %v1310 = vsub.f32 %v1048, %v1294
          %v1311 = vsub.f32 %v1049, %v1295
          %v1312 = vsub.f32 %v1050, %v1296
          %v1313 = vsub.f32 %v1051, %v1297
          %v1314 = vsub.f32 %v1052, %v1298
          %v1315 = vsub.f32 %v1053, %v1299
          %v1316 = vsub.f32 %v1054, %v1300
          %v1317 = vsub.f32 %v1055, %v1301
          %v1318 = vld [vmem:[#allocation3] sm:$0xff]
          %v1319 = vld [vmem:[#allocation3 + $0x8] sm:$0xff]
          %v1320 = vld [vmem:[#allocation3 + $0x10] sm:$0xff]
          %v1321 = vld [vmem:[#allocation3 + $0x18] sm:$0xff]
          %v1322 = vld [vmem:[#allocation3 + $0x20] sm:$0xff]
          %v1323 = vld [vmem:[#allocation3 + $0x28] sm:$0xff]
          %v1324 = vld [vmem:[#allocation3 + $0x30] sm:$0xff]
          %v1325 = vld [vmem:[#allocation3 + $0x38] sm:$0xff]
          %v1326 = vld [vmem:[#allocation3 + $0x40] sm:$0xff]
          %v1327 = vld [vmem:[#allocation3 + $0x48] sm:$0xff]
          %v1328 = vld [vmem:[#allocation3 + $0x50] sm:$0xff]
          %v1329 = vld [vmem:[#allocation3 + $0x58] sm:$0xff]
          %v1330 = vld [vmem:[#allocation3 + $0x60] sm:$0xff]
          %v1331 = vld [vmem:[#allocation3 + $0x68] sm:$0xff]
          %v1332 = vld [vmem:[#allocation3 + $0x70] sm:$0xff]
          %v1333 = vld [vmem:[#allocation3 + $0x78] sm:$0xff]
          %1334 = vxpose.xlu0.b32.start [1/16] %v1039, 128
          %1335 = vxpose.xlu0.b32.cont [2/16] 0.0, 128
          %1336 = vxpose.xlu0.b32.cont [3/16] 0.0, 128
          %1337 = vxpose.xlu0.b32.cont [4/16] 0.0, 128
          %1338 = vxpose.xlu0.b32.cont [5/16] 0.0, 128
          %1339 = vxpose.xlu0.b32.cont [6/16] 0.0, 128
          %1340 = vxpose.xlu0.b32.cont [7/16] 0.0, 128
          %1341 = vxpose.xlu0.b32.cont [8/16] 0.0, 128
          %1342 = vxpose.xlu0.b32.cont [9/16] 0.0, 128
          %1343 = vxpose.xlu0.b32.cont [10/16] 0.0, 128
          %1344 = vxpose.xlu0.b32.cont [11/16] 0.0, 128
          %1345 = vxpose.xlu0.b32.cont [12/16] 0.0, 128
          %1346 = vxpose.xlu0.b32.cont [13/16] 0.0, 128
          %1347 = vxpose.xlu0.b32.cont [14/16] 0.0, 128
          %1348 = vxpose.xlu0.b32.cont [15/16] 0.0, 128
          %1349 = vxpose.xlu0.b32.end [16/16] 0.0, 128
          %v1350 = vpop.trf.xlu0
          %v1351 = vpop.trf.xlu0
          %v1352 = vpop.trf.xlu0
          %v1353 = vpop.trf.xlu0
          %v1354 = vpop.trf.xlu0
          %v1355 = vpop.trf.xlu0
          %v1356 = vpop.trf.xlu0
          %v1357 = vpop.trf.xlu0
          %v1358 = vpop.trf.xlu0
          %v1359 = vpop.trf.xlu0
          %v1360 = vpop.trf.xlu0
          %v1361 = vpop.trf.xlu0
          %v1362 = vpop.trf.xlu0
          %v1363 = vpop.trf.xlu0
          %v1364 = vpop.trf.xlu0
          %v1365 = vpop.trf.xlu0
          %v1367 = vsel %vm1088, %v1350, 0
          %v1370 = vsel %vm1088, %v1351, 0
          %v1373 = vsel %vm1088, %v1352, 0
          %v1376 = vsel %vm1088, %v1353, 0
          %v1379 = vsel %vm1088, %v1354, 0
          %v1382 = vsel %vm1088, %v1355, 0
          %v1385 = vsel %vm1088, %v1356, 0
          %v1388 = vsel %vm1088, %v1357, 0
          %v1391 = vsel %vm1088, %v1358, 0
          %v1394 = vsel %vm1088, %v1359, 0
          %v1397 = vsel %vm1088, %v1360, 0
          %v1400 = vsel %vm1088, %v1361, 0
          %v1403 = vsel %vm1088, %v1362, 0
          %v1406 = vsel %vm1088, %v1363, 0
          %v1409 = vsel %vm1088, %v1364, 0
          %v1412 = vsel %vm1088, %v1365, 0
          %1414 = vmatprep.subr.mxu0 0.0
          %1415 = vmatpush1.msra.mxu0 %v1139
          %1416 = vmatprep.subr.mxu0 0.0
          %1417 = vmatpush1.msra.mxu0 0.0
          %1418 = vmatprep.subr.mxu0 0.0
          %1419 = vmatpush1.msra.mxu0 0.0
          %1420 = vmatprep.subr.mxu0 0.0
          %1421 = vmatpush1.msra.mxu0 0.0
          %1422 = vmatprep.subr.mxu0 0.0
          %1423 = vmatpush1.msra.mxu0 0.0
          %1424 = vmatprep.subr.mxu0 0.0
          %1425 = vmatpush1.msra.mxu0 0.0
          %1426 = vmatprep.subr.mxu0 0.0
          %1427 = vmatpush1.msra.mxu0 0.0
          %1428 = vmatprep.subr.mxu0 0.0
          %1429 = vmatpush1.msra.mxu0 0.0
          %1430 = vmatprep.subr.mxu0 0.0
          %1431 = vmatpush1.msra.mxu0 0.0
          %1432 = vmatprep.subr.mxu0 0.0
          %1433 = vmatpush1.msra.mxu0 0.0
          %1434 = vmatprep.subr.mxu0 0.0
          %1435 = vmatpush1.msra.mxu0 0.0
          %1436 = vmatprep.subr.mxu0 0.0
          %1437 = vmatpush1.msra.mxu0 0.0
          %1438 = vmatprep.subr.mxu0 0.0
          %1439 = vmatpush1.msra.mxu0 0.0
          %1440 = vmatprep.subr.mxu0 0.0
          %1441 = vmatpush1.msra.mxu0 0.0
          %1442 = vmatprep.subr.mxu0 0.0
          %1443 = vmatpush1.msra.mxu0 0.0
          %1444 = vmatprep.subr.mxu0 0.0
          %1445 = vmatpush1.msra.mxu0 0.0
          %1446 = vmatprep.subr.mxu0 0.0
          %1447 = vmatpush1.msra.mxu0 0.0
          %1448 = vmatprep.subr.mxu0 0.0
          %1449 = vmatpush1.msra.mxu0 0.0
          %1450 = vmatprep.subr.mxu0 0.0
          %1451 = vmatpush1.msra.mxu0 0.0
          %1452 = vmatprep.subr.mxu0 0.0
          %1453 = vmatpush1.msra.mxu0 0.0
          %1454 = vmatprep.subr.mxu0 0.0
          %1455 = vmatpush1.msra.mxu0 0.0
          %1456 = vmatprep.subr.mxu0 0.0
          %1457 = vmatpush1.msra.mxu0 0.0
          %1458 = vmatprep.subr.mxu0 0.0
          %1459 = vmatpush1.msra.mxu0 0.0
          %1460 = vmatprep.subr.mxu0 0.0
          %1461 = vmatpush1.msra.mxu0 0.0
          %1462 = vmatprep.subr.mxu0 0.0
          %1463 = vmatpush1.msra.mxu0 0.0
          %1464 = vmatprep.subr.mxu0 0.0
          %1465 = vmatpush1.msra.mxu0 0.0
          %1466 = vmatprep.subr.mxu0 0.0
          %1467 = vmatpush1.msra.mxu0 0.0
          %1468 = vmatprep.subr.mxu0 0.0
          %1469 = vmatpush1.msra.mxu0 0.0
          %1470 = vmatprep.subr.mxu0 0.0
          %1471 = vmatpush1.msra.mxu0 0.0
          %1472 = vmatprep.subr.mxu0 0.0
          %1473 = vmatpush1.msra.mxu0 0.0
          %1474 = vmatprep.subr.mxu0 0.0
          %1475 = vmatpush1.msra.mxu0 0.0
          %1476 = vmatprep.subr.mxu0 0.0
          %1477 = vmatpush1.msra.mxu0 0.0
          %1478 = vmatprep.mubr.f32.mxu0 0.0
          %1479 = vmatmul.mubr.f32.gmra.mrb[0].mxu0 %v1367
          %v1480 = vpop.f32.mrb[0].mxu0
          %v1481 = vadd.f32 0.0, %v1480
          %v1482 = vpop.f32.mrb[0].mxu0
          %1483 = vmatprep.mubr.f32.mxu0 0.0
          %1484 = vmatmul.mubr.f32.gmra.mrb[0].mxu0 %v1370
          %v1485 = vpop.f32.mrb[0].mxu0
          %v1486 = vadd.f32 0.0, %v1485
          %v1487 = vpop.f32.mrb[0].mxu0
          %1488 = vmatprep.mubr.f32.mxu0 0.0
          %1489 = vmatmul.mubr.f32.gmra.mrb[0].mxu0 %v1373
          %v1490 = vpop.f32.mrb[0].mxu0
          %v1491 = vadd.f32 0.0, %v1490
          %v1492 = vpop.f32.mrb[0].mxu0
          %1493 = vmatprep.mubr.f32.mxu0 0.0
          %1494 = vmatmul.mubr.f32.gmra.mrb[0].mxu0 %v1376
          %v1495 = vpop.f32.mrb[0].mxu0
          %v1496 = vadd.f32 0.0, %v1495
          %v1497 = vpop.f32.mrb[0].mxu0
          %1498 = vmatprep.mubr.f32.mxu0 0.0
          %1499 = vmatmul.mubr.f32.gmra.mrb[0].mxu0 %v1379
          %v1500 = vpop.f32.mrb[0].mxu0
          %v1501 = vadd.f32 0.0, %v1500
          %v1502 = vpop.f32.mrb[0].mxu0
          %1503 = vmatprep.mubr.f32.mxu0 0.0
          %1504 = vmatmul.mubr.f32.gmra.mrb[0].mxu0 %v1382
          %v1505 = vpop.f32.mrb[0].mxu0
          %v1506 = vadd.f32 0.0, %v1505
          %v1507 = vpop.f32.mrb[0].mxu0
          %1508 = vmatprep.mubr.f32.mxu0 0.0
          %1509 = vmatmul.mubr.f32.gmra.mrb[0].mxu0 %v1385
          %v1510 = vpop.f32.mrb[0].mxu0
          %v1511 = vadd.f32 0.0, %v1510
          %v1512 = vpop.f32.mrb[0].mxu0
          %1513 = vmatprep.mubr.f32.mxu0 0.0
          %1514 = vmatmul.mubr.f32.gmra.mrb[0].mxu0 %v1388
          %v1515 = vpop.f32.mrb[0].mxu0
          %v1516 = vadd.f32 0.0, %v1515
          %v1517 = vpop.f32.mrb[0].mxu0
          %1518 = vmatprep.mubr.f32.mxu0 0.0
          %1519 = vmatmul.mubr.f32.gmra.mrb[0].mxu0 %v1391
          %v1520 = vpop.f32.mrb[0].mxu0
          %v1521 = vadd.f32 0.0, %v1520
          %v1522 = vpop.f32.mrb[0].mxu0
          %1523 = vmatprep.mubr.f32.mxu0 0.0
          %1524 = vmatmul.mubr.f32.gmra.mrb[0].mxu0 %v1394
          %v1525 = vpop.f32.mrb[0].mxu0
          %v1526 = vadd.f32 0.0, %v1525
          %v1527 = vpop.f32.mrb[0].mxu0
          %1528 = vmatprep.mubr.f32.mxu0 0.0
          %1529 = vmatmul.mubr.f32.gmra.mrb[0].mxu0 %v1397
          %v1530 = vpop.f32.mrb[0].mxu0
          %v1531 = vadd.f32 0.0, %v1530
          %v1532 = vpop.f32.mrb[0].mxu0
          %1533 = vmatprep.mubr.f32.mxu0 0.0
          %1534 = vmatmul.mubr.f32.gmra.mrb[0].mxu0 %v1400
          %v1535 = vpop.f32.mrb[0].mxu0
          %v1536 = vadd.f32 0.0, %v1535
          %v1537 = vpop.f32.mrb[0].mxu0
          %1538 = vmatprep.mubr.f32.mxu0 0.0
          %1539 = vmatmul.mubr.f32.gmra.mrb[0].mxu0 %v1403
          %v1540 = vpop.f32.mrb[0].mxu0
          %v1541 = vadd.f32 0.0, %v1540
          %v1542 = vpop.f32.mrb[0].mxu0
          %1543 = vmatprep.mubr.f32.mxu0 0.0
          %1544 = vmatmul.mubr.f32.gmra.mrb[0].mxu0 %v1406
          %v1545 = vpop.f32.mrb[0].mxu0
          %v1546 = vadd.f32 0.0, %v1545
          %v1547 = vpop.f32.mrb[0].mxu0
          %1548 = vmatprep.mubr.f32.mxu0 0.0
          %1549 = vmatmul.mubr.f32.gmra.mrb[0].mxu0 %v1409
          %v1550 = vpop.f32.mrb[0].mxu0
          %v1551 = vadd.f32 0.0, %v1550
          %v1552 = vpop.f32.mrb[0].mxu0
          %1553 = vmatprep.mubr.f32.mxu0 0.0
          %1554 = vmatmul.mubr.f32.gmra.mrb[0].mxu0 %v1412
          %v1555 = vpop.f32.mrb[0].mxu0
          %v1556 = vadd.f32 0.0, %v1555
          %v1557 = vpop.f32.mrb[0].mxu0
          %1558 = vdwg.mxu0
          %v1559 = vmul.f32 %v1481, 0.005
          %v1560 = vmul.f32 %v1486, 0.005
          %v1561 = vmul.f32 %v1491, 0.005
          %v1562 = vmul.f32 %v1496, 0.005
          %v1563 = vmul.f32 %v1501, 0.005
          %v1564 = vmul.f32 %v1506, 0.005
          %v1565 = vmul.f32 %v1511, 0.005
          %v1566 = vmul.f32 %v1516, 0.005
          %v1567 = vmul.f32 %v1521, 0.005
          %v1568 = vmul.f32 %v1526, 0.005
          %v1569 = vmul.f32 %v1531, 0.005
          %v1570 = vmul.f32 %v1536, 0.005
          %v1571 = vmul.f32 %v1541, 0.005
          %v1572 = vmul.f32 %v1546, 0.005
          %v1573 = vmul.f32 %v1551, 0.005
          %v1574 = vmul.f32 %v1556, 0.005
          %v1575 = vsub.f32 %v1318, %v1559
          %v1576 = vsub.f32 %v1319, %v1560
          %v1577 = vsub.f32 %v1320, %v1561
          %v1578 = vsub.f32 %v1321, %v1562
          %v1579 = vsub.f32 %v1322, %v1563
          %v1580 = vsub.f32 %v1323, %v1564
          %v1581 = vsub.f32 %v1324, %v1565
          %v1582 = vsub.f32 %v1325, %v1566
          %v1583 = vsub.f32 %v1326, %v1567
          %v1584 = vsub.f32 %v1327, %v1568
          %v1585 = vsub.f32 %v1328, %v1569
          %v1586 = vsub.f32 %v1329, %v1570
          %v1587 = vsub.f32 %v1330, %v1571
          %v1588 = vsub.f32 %v1331, %v1572
          %v1589 = vsub.f32 %v1332, %v1573
          %v1590 = vsub.f32 %v1333, %v1574
          %v1591 = vmul.f32 %v1302, %v1302
          %v1592 = vmul.f32 %v1303, %v1303
          %v1593 = vmul.f32 %v1304, %v1304
          %v1594 = vmul.f32 %v1305, %v1305
          %v1595 = vmul.f32 %v1306, %v1306
          %v1596 = vmul.f32 %v1307, %v1307
          %v1597 = vmul.f32 %v1308, %v1308
          %v1598 = vmul.f32 %v1309, %v1309
          %v1599 = vmul.f32 %v1310, %v1310
          %v1600 = vmul.f32 %v1311, %v1311
          %v1601 = vmul.f32 %v1312, %v1312
          %v1602 = vmul.f32 %v1313, %v1313
          %v1603 = vmul.f32 %v1314, %v1314
          %v1604 = vmul.f32 %v1315, %v1315
          %v1605 = vmul.f32 %v1316, %v1316
          %v1606 = vmul.f32 %v1317, %v1317
          %v1607 = vadd.f32 %v1591, %v1592
          %v1608 = vadd.f32 %v1607, %v1593
          %v1609 = vadd.f32 %v1608, %v1594
          %v1610 = vadd.f32 %v1609, %v1595
          %v1611 = vadd.f32 %v1610, %v1596
          %v1612 = vadd.f32 %v1611, %v1597
          %v1613 = vadd.f32 %v1612, %v1598
          %v1614 = vadd.f32 %v1613, %v1599
          %v1615 = vadd.f32 %v1614, %v1600
          %v1616 = vadd.f32 %v1615, %v1601
          %v1617 = vadd.f32 %v1616, %v1602
          %v1618 = vadd.f32 %v1617, %v1603
          %v1619 = vadd.f32 %v1618, %v1604
          %v1620 = vadd.f32 %v1619, %v1605
          %v1621 = vadd.f32 %v1620, %v1606
          %1622 = vadd.xlane.f32.xlu0 %v1621
          %v1623 = vpop.xlane.xlu0 %1622
          %v1624 = vrot.slane %v1623, 4
          %v1625 = vadd.f32 %v1623, %v1624
          %v1626 = vrot.slane %v1625, 2
          %v1627 = vadd.f32 %v1625, %v1626
          %v1628 = vrot.slane %v1627, 1
          %v1629 = vadd.f32 %v1627, %v1628
          %s1630 = vtos %v1629
          %s1631 = scalar_lea.smem [#allocation12], 0
          %1632 = sst [smem:[%s1631]] %s1630
          %v1633 = vmul.f32 %v1575, %v1575
          %v1634 = vmul.f32 %v1576, %v1576
          %v1635 = vmul.f32 %v1577, %v1577
          %v1636 = vmul.f32 %v1578, %v1578
          %v1637 = vmul.f32 %v1579, %v1579
          %v1638 = vmul.f32 %v1580, %v1580
          %v1639 = vmul.f32 %v1581, %v1581
          %v1640 = vmul.f32 %v1582, %v1582
          %v1641 = vmul.f32 %v1583, %v1583
          %v1642 = vmul.f32 %v1584, %v1584
          %v1643 = vmul.f32 %v1585, %v1585
          %v1644 = vmul.f32 %v1586, %v1586
          %v1645 = vmul.f32 %v1587, %v1587
          %v1646 = vmul.f32 %v1588, %v1588
          %v1647 = vmul.f32 %v1589, %v1589
          %v1648 = vmul.f32 %v1590, %v1590
          %v1649 = vadd.f32 %v1633, %v1634
          %v1650 = vadd.f32 %v1649, %v1635
          %v1651 = vadd.f32 %v1650, %v1636
          %v1652 = vadd.f32 %v1651, %v1637
          %v1653 = vadd.f32 %v1652, %v1638
          %v1654 = vadd.f32 %v1653, %v1639
          %v1655 = vadd.f32 %v1654, %v1640
          %v1656 = vadd.f32 %v1655, %v1641
          %v1657 = vadd.f32 %v1656, %v1642
          %v1658 = vadd.f32 %v1657, %v1643
          %v1659 = vadd.f32 %v1658, %v1644
          %v1660 = vadd.f32 %v1659, %v1645
          %v1661 = vadd.f32 %v1660, %v1646
          %v1662 = vadd.f32 %v1661, %v1647
          %v1663 = vadd.f32 %v1662, %v1648
          %1664 = vadd.xlane.f32.xlu0 %v1663
          %v1665 = vpop.xlane.xlu0 %1664
          %v1666 = vrot.slane %v1665, 4
          %v1667 = vadd.f32 %v1665, %v1666
          %v1668 = vrot.slane %v1667, 2
          %v1669 = vadd.f32 %v1667, %v1668
          %v1670 = vrot.slane %v1669, 1
          %v1671 = vadd.f32 %v1669, %v1670
          %s1672 = vtos %v1671
          %s1673 = scalar_lea.smem [#allocation12], 1
          %1674 = sst [smem:[%s1673]] %s1672
          %v1675 = vld [vmem:[#allocation4] sm:$0xff]
          %v1676 = vld [vmem:[#allocation4 + $0x8] sm:$0xff]
          %v1677 = vld [vmem:[#allocation4 + $0x10] sm:$0xff]
          %v1678 = vld [vmem:[#allocation4 + $0x18] sm:$0xff]
          %v1679 = vld [vmem:[#allocation4 + $0x20] sm:$0xff]
          %v1680 = vld [vmem:[#allocation4 + $0x28] sm:$0xff]
          %v1681 = vld [vmem:[#allocation4 + $0x30] sm:$0xff]
          %v1682 = vld [vmem:[#allocation4 + $0x38] sm:$0xff]
          %v1683 = vld [vmem:[#allocation4 + $0x40] sm:$0xff]
          %v1684 = vld [vmem:[#allocation4 + $0x48] sm:$0xff]
          %v1685 = vld [vmem:[#allocation4 + $0x50] sm:$0xff]
          %v1686 = vld [vmem:[#allocation4 + $0x58] sm:$0xff]
          %v1687 = vld [vmem:[#allocation4 + $0x60] sm:$0xff]
          %v1688 = vld [vmem:[#allocation4 + $0x68] sm:$0xff]
          %v1689 = vld [vmem:[#allocation4 + $0x70] sm:$0xff]
          %v1690 = vld [vmem:[#allocation4 + $0x78] sm:$0xff]
          %v1692 = vsel %vm1137, %v1038, 0
          %1694 = vmatprep.subr.mxu0 0.0
          %1695 = vmatpush1.msra.mxu0 %v1692
          %1696 = vmatprep.subr.mxu0 0.0
          %1697 = vmatpush1.msra.mxu0 0.0
          %1698 = vmatprep.subr.mxu0 0.0
          %1699 = vmatpush1.msra.mxu0 0.0
          %1700 = vmatprep.subr.mxu0 0.0
          %1701 = vmatpush1.msra.mxu0 0.0
          %1702 = vmatprep.subr.mxu0 0.0
          %1703 = vmatpush1.msra.mxu0 0.0
          %1704 = vmatprep.subr.mxu0 0.0
          %1705 = vmatpush1.msra.mxu0 0.0
          %1706 = vmatprep.subr.mxu0 0.0
          %1707 = vmatpush1.msra.mxu0 0.0
          %1708 = vmatprep.subr.mxu0 0.0
          %1709 = vmatpush1.msra.mxu0 0.0
          %1710 = vmatprep.subr.mxu0 0.0
          %1711 = vmatpush1.msra.mxu0 0.0
          %1712 = vmatprep.subr.mxu0 0.0
          %1713 = vmatpush1.msra.mxu0 0.0
          %1714 = vmatprep.subr.mxu0 0.0
          %1715 = vmatpush1.msra.mxu0 0.0
          %1716 = vmatprep.subr.mxu0 0.0
          %1717 = vmatpush1.msra.mxu0 0.0
          %1718 = vmatprep.subr.mxu0 0.0
          %1719 = vmatpush1.msra.mxu0 0.0
          %1720 = vmatprep.subr.mxu0 0.0
          %1721 = vmatpush1.msra.mxu0 0.0
          %1722 = vmatprep.subr.mxu0 0.0
          %1723 = vmatpush1.msra.mxu0 0.0
          %1724 = vmatprep.subr.mxu0 0.0
          %1725 = vmatpush1.msra.mxu0 0.0
          %1726 = vmatprep.subr.mxu0 0.0
          %1727 = vmatpush1.msra.mxu0 0.0
          %1728 = vmatprep.subr.mxu0 0.0
          %1729 = vmatpush1.msra.mxu0 0.0
          %1730 = vmatprep.subr.mxu0 0.0
          %1731 = vmatpush1.msra.mxu0 0.0
          %1732 = vmatprep.subr.mxu0 0.0
          %1733 = vmatpush1.msra.mxu0 0.0
          %1734 = vmatprep.subr.mxu0 0.0
          %1735 = vmatpush1.msra.mxu0 0.0
          %1736 = vmatprep.subr.mxu0 0.0
          %1737 = vmatpush1.msra.mxu0 0.0
          %1738 = vmatprep.subr.mxu0 0.0
          %1739 = vmatpush1.msra.mxu0 0.0
          %1740 = vmatprep.subr.mxu0 0.0
          %1741 = vmatpush1.msra.mxu0 0.0
          %1742 = vmatprep.subr.mxu0 0.0
          %1743 = vmatpush1.msra.mxu0 0.0
          %1744 = vmatprep.subr.mxu0 0.0
          %1745 = vmatpush1.msra.mxu0 0.0
          %1746 = vmatprep.subr.mxu0 0.0
          %1747 = vmatpush1.msra.mxu0 0.0
          %1748 = vmatprep.subr.mxu0 0.0
          %1749 = vmatpush1.msra.mxu0 0.0
          %1750 = vmatprep.subr.mxu0 0.0
          %1751 = vmatpush1.msra.mxu0 0.0
          %1752 = vmatprep.subr.mxu0 0.0
          %1753 = vmatpush1.msra.mxu0 0.0
          %1754 = vmatprep.subr.mxu0 0.0
          %1755 = vmatpush1.msra.mxu0 0.0
          %1756 = vmatprep.subr.mxu0 0.0
          %1757 = vmatpush1.msra.mxu0 0.0
          %1758 = vmatprep.mubr.f32.mxu0 0.0
          %1759 = vmatmul.mubr.f32.gmra.mrb[0].mxu0 %v1090
          %v1760 = vpop.f32.mrb[0].mxu0
          %v1761 = vadd.f32 0.0, %v1760
          %v1762 = vpop.f32.mrb[0].mxu0
          %1763 = vmatprep.mubr.f32.mxu0 0.0
          %1764 = vmatmul.mubr.f32.gmra.mrb[0].mxu0 %v1093
          %v1765 = vpop.f32.mrb[0].mxu0
          %v1766 = vadd.f32 0.0, %v1765
          %v1767 = vpop.f32.mrb[0].mxu0
          %1768 = vmatprep.mubr.f32.mxu0 0.0
          %1769 = vmatmul.mubr.f32.gmra.mrb[0].mxu0 %v1096
          %v1770 = vpop.f32.mrb[0].mxu0
          %v1771 = vadd.f32 0.0, %v1770
          %v1772 = vpop.f32.mrb[0].mxu0
          %1773 = vmatprep.mubr.f32.mxu0 0.0
          %1774 = vmatmul.mubr.f32.gmra.mrb[0].mxu0 %v1099
          %v1775 = vpop.f32.mrb[0].mxu0
          %v1776 = vadd.f32 0.0, %v1775
          %v1777 = vpop.f32.mrb[0].mxu0
          %1778 = vmatprep.mubr.f32.mxu0 0.0
          %1779 = vmatmul.mubr.f32.gmra.mrb[0].mxu0 %v1102
          %v1780 = vpop.f32.mrb[0].mxu0
          %v1781 = vadd.f32 0.0, %v1780
          %v1782 = vpop.f32.mrb[0].mxu0
          %1783 = vmatprep.mubr.f32.mxu0 0.0
          %1784 = vmatmul.mubr.f32.gmra.mrb[0].mxu0 %v1105
          %v1785 = vpop.f32.mrb[0].mxu0
          %v1786 = vadd.f32 0.0, %v1785
          %v1787 = vpop.f32.mrb[0].mxu0
          %1788 = vmatprep.mubr.f32.mxu0 0.0
          %1789 = vmatmul.mubr.f32.gmra.mrb[0].mxu0 %v1108
          %v1790 = vpop.f32.mrb[0].mxu0
          %v1791 = vadd.f32 0.0, %v1790
          %v1792 = vpop.f32.mrb[0].mxu0
          %1793 = vmatprep.mubr.f32.mxu0 0.0
          %1794 = vmatmul.mubr.f32.gmra.mrb[0].mxu0 %v1111
          %v1795 = vpop.f32.mrb[0].mxu0
          %v1796 = vadd.f32 0.0, %v1795
          %v1797 = vpop.f32.mrb[0].mxu0
          %1798 = vmatprep.mubr.f32.mxu0 0.0
          %1799 = vmatmul.mubr.f32.gmra.mrb[0].mxu0 %v1114
          %v1800 = vpop.f32.mrb[0].mxu0
          %v1801 = vadd.f32 0.0, %v1800
          %v1802 = vpop.f32.mrb[0].mxu0
          %1803 = vmatprep.mubr.f32.mxu0 0.0
          %1804 = vmatmul.mubr.f32.gmra.mrb[0].mxu0 %v1117
          %v1805 = vpop.f32.mrb[0].mxu0
          %v1806 = vadd.f32 0.0, %v1805
          %v1807 = vpop.f32.mrb[0].mxu0
          %1808 = vmatprep.mubr.f32.mxu0 0.0
          %1809 = vmatmul.mubr.f32.gmra.mrb[0].mxu0 %v1120
          %v1810 = vpop.f32.mrb[0].mxu0
          %v1811 = vadd.f32 0.0, %v1810
          %v1812 = vpop.f32.mrb[0].mxu0
          %1813 = vmatprep.mubr.f32.mxu0 0.0
          %1814 = vmatmul.mubr.f32.gmra.mrb[0].mxu0 %v1123
          %v1815 = vpop.f32.mrb[0].mxu0
          %v1816 = vadd.f32 0.0, %v1815
          %v1817 = vpop.f32.mrb[0].mxu0
          %1818 = vmatprep.mubr.f32.mxu0 0.0
          %1819 = vmatmul.mubr.f32.gmra.mrb[0].mxu0 %v1126
          %v1820 = vpop.f32.mrb[0].mxu0
          %v1821 = vadd.f32 0.0, %v1820
          %v1822 = vpop.f32.mrb[0].mxu0
          %1823 = vmatprep.mubr.f32.mxu0 0.0
          %1824 = vmatmul.mubr.f32.gmra.mrb[0].mxu0 %v1129
          %v1825 = vpop.f32.mrb[0].mxu0
          %v1826 = vadd.f32 0.0, %v1825
          %v1827 = vpop.f32.mrb[0].mxu0
          %1828 = vmatprep.mubr.f32.mxu0 0.0
          %1829 = vmatmul.mubr.f32.gmra.mrb[0].mxu0 %v1132
          %v1830 = vpop.f32.mrb[0].mxu0
          %v1831 = vadd.f32 0.0, %v1830
          %v1832 = vpop.f32.mrb[0].mxu0
          %1833 = vmatprep.mubr.f32.mxu0 0.0
          %1834 = vmatmul.mubr.f32.gmra.mrb[0].mxu0 %v1135
          %v1835 = vpop.f32.mrb[0].mxu0
          %v1836 = vadd.f32 0.0, %v1835
          %v1837 = vpop.f32.mrb[0].mxu0
          %1838 = vdwg.mxu0
          %v1839 = vmul.f32 %v1761, 0.005
          %v1840 = vmul.f32 %v1766, 0.005
          %v1841 = vmul.f32 %v1771, 0.005
          %v1842 = vmul.f32 %v1776, 0.005
          %v1843 = vmul.f32 %v1781, 0.005
          %v1844 = vmul.f32 %v1786, 0.005
          %v1845 = vmul.f32 %v1791, 0.005
          %v1846 = vmul.f32 %v1796, 0.005
          %v1847 = vmul.f32 %v1801, 0.005
          %v1848 = vmul.f32 %v1806, 0.005
          %v1849 = vmul.f32 %v1811, 0.005
          %v1850 = vmul.f32 %v1816, 0.005
          %v1851 = vmul.f32 %v1821, 0.005
          %v1852 = vmul.f32 %v1826, 0.005
          %v1853 = vmul.f32 %v1831, 0.005
          %v1854 = vmul.f32 %v1836, 0.005
          %v1855 = vsub.f32 %v1675, %v1839
          %v1856 = vsub.f32 %v1676, %v1840
          %v1857 = vsub.f32 %v1677, %v1841
          %v1858 = vsub.f32 %v1678, %v1842
          %v1859 = vsub.f32 %v1679, %v1843
          %v1860 = vsub.f32 %v1680, %v1844
          %v1861 = vsub.f32 %v1681, %v1845
          %v1862 = vsub.f32 %v1682, %v1846
          %v1863 = vsub.f32 %v1683, %v1847
          %v1864 = vsub.f32 %v1684, %v1848
          %v1865 = vsub.f32 %v1685, %v1849
          %v1866 = vsub.f32 %v1686, %v1850
          %v1867 = vsub.f32 %v1687, %v1851
          %v1868 = vsub.f32 %v1688, %v1852
          %v1869 = vsub.f32 %v1689, %v1853
          %v1870 = vsub.f32 %v1690, %v1854
          %v1871 = vmul.f32 %v1855, %v1855
          %v1872 = vmul.f32 %v1856, %v1856
          %v1873 = vmul.f32 %v1857, %v1857
          %v1874 = vmul.f32 %v1858, %v1858
          %v1875 = vmul.f32 %v1859, %v1859
          %v1876 = vmul.f32 %v1860, %v1860
          %v1877 = vmul.f32 %v1861, %v1861
          %v1878 = vmul.f32 %v1862, %v1862
          %v1879 = vmul.f32 %v1863, %v1863
          %v1880 = vmul.f32 %v1864, %v1864
          %v1881 = vmul.f32 %v1865, %v1865
          %v1882 = vmul.f32 %v1866, %v1866
          %v1883 = vmul.f32 %v1867, %v1867
          %v1884 = vmul.f32 %v1868, %v1868
          %v1885 = vmul.f32 %v1869, %v1869
          %v1886 = vmul.f32 %v1870, %v1870
          %v1887 = vadd.f32 %v1871, %v1872
          %v1888 = vadd.f32 %v1887, %v1873
          %v1889 = vadd.f32 %v1888, %v1874
          %v1890 = vadd.f32 %v1889, %v1875
          %v1891 = vadd.f32 %v1890, %v1876
          %v1892 = vadd.f32 %v1891, %v1877
          %v1893 = vadd.f32 %v1892, %v1878
          %v1894 = vadd.f32 %v1893, %v1879
          %v1895 = vadd.f32 %v1894, %v1880
          %v1896 = vadd.f32 %v1895, %v1881
          %v1897 = vadd.f32 %v1896, %v1882
          %v1898 = vadd.f32 %v1897, %v1883
          %v1899 = vadd.f32 %v1898, %v1884
          %v1900 = vadd.f32 %v1899, %v1885
          %v1901 = vadd.f32 %v1900, %v1886
          %1902 = vadd.xlane.f32.xlu0 %v1901
          %v1903 = vpop.xlane.xlu0 %1902
          %v1904 = vrot.slane %v1903, 4
          %v1905 = vadd.f32 %v1903, %v1904
          %v1906 = vrot.slane %v1905, 2
          %v1907 = vadd.f32 %v1905, %v1906
          %v1908 = vrot.slane %v1907, 1
          %v1909 = vadd.f32 %v1907, %v1908
          %s1910 = vtos %v1909
          %s1911 = scalar_lea.smem [#allocation12], 2
          %1912 = sst [smem:[%s1911]] %s1910
        $region44: #{tpu_custom_call.1} parent=27 // pred_fallthru
          _
        // Predicated region
        $region45: #{tpu_custom_call.1} parent=27 // pred_check
          %p1913 = pneg %p85
        $region46: #{tpu_custom_call.1} parent=27 // pred_check_branch
          %1915 = sbr.rel (%p1913) target = $region48
        $region47: #{tpu_custom_call.1} parent=27 // pred_region
          %s1917 = ssub.s32 16, 16
          %1918 = vsyncadd [#allocation9], %s1917
          %1921 = dma.smem_to_hbm [#allocation12], 16, %s2, [#allocation9]
        $region48: #{tpu_custom_call.1} parent=27 // pred_fallthru
          _
        // Predicated region
        $region49: #{tpu_custom_call.1} parent=27 // pred_check
          %p1922 = pneg %p85
        $region50: #{tpu_custom_call.1} parent=27 // pred_check_branch
          %1924 = sbr.rel (%p1922) target = $region52
        $region51: #{tpu_custom_call.1} parent=27 // pred_region
          %1925 = dma.done [#allocation9], 16
        $region52: #{tpu_custom_call.1} parent=27 // pred_fallthru
          _
        %1926 = sfence
      $region28: #{tpu_custom_call.1} parent=5 // pred_fallthru
        _
      %p1927 = scmp.le.s32.totalorder 2, %s15
      // Predicated region
      $region53: #{tpu_custom_call.1} parent=5 // pred_check
        %p1928 = pneg %p1927
      $region54: #{tpu_custom_call.1} parent=5 // pred_check_branch
        %1930 = sbr.rel (%p1928) target = $region56
      $region55: #{tpu_custom_call.1} parent=5 // pred_region
        %s1931 = ssub.s32 %s15, 2
      $region56: #{tpu_custom_call.1} parent=5 // pred_fallthru
        _
    $region6: #{tpu_custom_call.1} parent=1 // loop_footer
      %s19 = sadd.s32 1, %s15
    $region7: #{tpu_custom_call.1} parent=1 // loop_footer_branch
      %14 = sbr.rel target = $region3
    $region8: #{tpu_custom_call.1} parent=1 // loop_exit
      _
    %1932 = vsyncpa [#allocation8], 1
    %s1933 = scalar_lea.sflag [#allocation8], 1
    %1934 = vsyncpa %s1933, 1
    %1935 = vsyncpa [#allocation11], 1
    %s1936 = scalar_lea.sflag [#allocation11], 1
    %1937 = vsyncpa %s1936, 1
    %1938 = vsyncpa [#allocation9], 1
    %s1939 = scalar_lea.sflag [#allocation9], 1
    %1940 = vsyncpa %s1939, 1

</llo_original>
